<compile_context>
chip_gen: v5e
topology: v5e:2x2
jax: 0.10.0
libtpu: 0.0.40
codegen_flags: <defaults>
</compile_context>

<pallas_src>
import numpy as np
import jax
import jax.numpy as jnp
from jax import lax
from jax.experimental import pallas as pl
from jax.experimental.pallas import tpu as pltpu

# ---- hyperparameters implied by the module's __init__ ----
d_model = 32
d_k = 8
d_v = 8
n_head = 4
d_ff = 64
seq_len = 6
S = seq_len + 2          # conv channel count == sequence length of enc_inputs
B = 2
BS = B * S               # 16 rows processed in one kernel invocation

# ---- packed parameter layout: one (PACK_ROWS, 64) f32 buffer, static offsets ----
PACK_COLS = 64
WQ_OFF   = 0                              # 4 x (32, 8)  per-head Wq (pre-scaled by 1/sqrt(d_k))
WK_OFF   = WQ_OFF + n_head * d_model      # 4 x (32, 8)  per-head Wk
WV_OFF   = WK_OFF + n_head * d_model      # 4 x (32, 8)  per-head Wv
WO_OFF   = WV_OFF + n_head * d_model      # (32, 32)     Wo; head h uses rows WO_OFF+8h : +8
W1_OFF   = WO_OFF + d_model               # (32, 64)     fc1
W2_OFF   = W1_OFF + d_model               # (64, 32)     fc2
WC_OFF   = W2_OFF + d_ff                  # (16, 16)     block-diagonal conv weight
BC_OFF   = WC_OFF + BS                    # (16, 1)      conv bias (stacked per batch)
BQ_OFF   = BC_OFF + BS                    # 4 x (1, 8)   per-head bq (pre-scaled)
BK_OFF   = BQ_OFF + n_head                # 4 x (1, 8)
BV_OFF   = BK_OFF + n_head                # 4 x (1, 8)
BO_OFF   = BV_OFF + n_head                # (1, 32)
G_OFF    = BO_OFF + 1                     # (1, 32) LayerNorm gamma
BETA_OFF = G_OFF + 1                      # (1, 32) LayerNorm beta
B1_OFF   = BETA_OFF + 1                   # (1, 64)
B2_OFF   = B1_OFF + 1                     # (1, 32)
PACK_ROWS = ((B2_OFF + 1 + 7) // 8) * 8   # pad row count to a multiple of 8


def encoder_layer_kernel(x_ref, bias_ref, w_ref, out_ref):
    # x_ref    : (BS, d_model)   both batch elements row-stacked
    # bias_ref : (BS, BS)        additive attention bias (-1e9 user mask on the
    #                            per-batch diagonal blocks, -1e30 cross-batch)
    # w_ref    : (PACK_ROWS, 64) packed weights/biases, sliced statically below
    x = x_ref[...]
    bias = bias_ref[...]

    def blk(off, nrows, ncols):
        # static sub-window load from the packed weight buffer (free view + load)
        return w_ref[off:off + nrows, 0:ncols]

    # --- MultiHeadAttention: per-head weights live in row blocks, so there is
    #     no lane slicing; head outputs accumulate straight through W_o rows. ---
    attn_out = jnp.zeros((BS, d_model), jnp.float32)
    for h in range(n_head):                                   # static unroll (4)
        wq_h = blk(WQ_OFF + h * d_model, d_model, d_k)        # already * 1/sqrt(d_k)
        wk_h = blk(WK_OFF + h * d_model, d_model, d_k)
        wv_h = blk(WV_OFF + h * d_model, d_model, d_v)
        wo_h = blk(WO_OFF + h * d_v, d_v, d_model)
        bq_h = blk(BQ_OFF + h, 1, d_k)                        # already * 1/sqrt(d_k)
        bk_h = blk(BK_OFF + h, 1, d_k)
        bv_h = blk(BV_OFF + h, 1, d_v)

        qh = jnp.dot(x, wq_h, preferred_element_type=jnp.float32) + bq_h   # (BS, d_k)
        kh = jnp.dot(x, wk_h, preferred_element_type=jnp.float32) + bk_h   # (BS, d_k)
        vh = jnp.dot(x, wv_h, preferred_element_type=jnp.float32) + bv_h   # (BS, d_v)

        # q @ k.T without materializing a transpose (trans_b dot_general)
        scores = lax.dot_general(qh, kh, (((1,), (1,)), ((), ())),
                                 preferred_element_type=jnp.float32) + bias  # (BS, BS)
        m = jnp.max(scores, axis=-1, keepdims=True)
        e = jnp.exp(scores - m)
        attn = e * pl.reciprocal(jnp.sum(e, axis=-1, keepdims=True), approx=False)

        ctx = jnp.dot(attn, vh, preferred_element_type=jnp.float32)          # (BS, d_v)
        attn_out = attn_out + jnp.dot(ctx, wo_h,
                                      preferred_element_type=jnp.float32)    # (BS, d_model)

    attn_out = attn_out + blk(BO_OFF, 1, d_model)

    # --- Add & LayerNorm over the feature (lane) axis ---
    y = attn_out + x
    mean = jnp.mean(y, axis=-1, keepdims=True)
    var = jnp.mean((y - mean) ** 2, axis=-1, keepdims=True)
    y = (y - mean) * lax.rsqrt(var + 1e-5)
    y = y * blk(G_OFF, 1, d_model) + blk(BETA_OFF, 1, d_model)

    # --- Conv1d(kernel_size=1) over the S (channel) axis for BOTH batch
    #     elements at once (block-diagonal weight), Dropout (eval), ReLU ---
    # TODO(synk): Dropout(0.5) is treated as identity (inference mode); no RNG.
    y = jnp.dot(blk(WC_OFF, BS, BS), y,
                preferred_element_type=jnp.float32) + blk(BC_OFF, BS, 1)
    y = jnp.maximum(y, 0.0)

    # --- PoswiseFeedForwardNet: fc2(relu(fc1(x))) ---
    h1 = jnp.dot(y, blk(W1_OFF, d_model, d_ff),
                 preferred_element_type=jnp.float32) + blk(B1_OFF, 1, d_ff)
    h1 = jnp.maximum(h1, 0.0)
    out_ref[...] = jnp.dot(h1, blk(W2_OFF, d_ff, d_model),
                           preferred_element_type=jnp.float32) + blk(B2_OFF, 1, d_model)


def pack_params(params):
    """Pack all 16 weight/bias arrays into one (PACK_ROWS, 64) f32 buffer."""
    (wq, bq, wk, bk, wv, bv, wo, bo, g, beta, wc, bc, w1, b1, w2, b2) = [
        np.asarray(p, np.float32) for p in params]
    scale = np.float32(1.0 / np.sqrt(d_k))
    p = np.zeros((PACK_ROWS, PACK_COLS), np.float32)
    for h in range(n_head):
        p[WQ_OFF + h * d_model: WQ_OFF + (h + 1) * d_model, :d_k] = \
            wq[:, h * d_k:(h + 1) * d_k] * scale               # fold 1/sqrt(d_k)
        p[WK_OFF + h * d_model: WK_OFF + (h + 1) * d_model, :d_k] = \
            wk[:, h * d_k:(h + 1) * d_k]
        p[WV_OFF + h * d_model: WV_OFF + (h + 1) * d_model, :d_v] = \
            wv[:, h * d_v:(h + 1) * d_v]
        p[BQ_OFF + h, :d_k] = bq[0, h * d_k:(h + 1) * d_k] * scale
        p[BK_OFF + h, :d_k] = bk[0, h * d_k:(h + 1) * d_k]
        p[BV_OFF + h, :d_v] = bv[0, h * d_v:(h + 1) * d_v]
    p[WO_OFF:WO_OFF + d_model, :d_model] = wo
    p[W1_OFF:W1_OFF + d_model, :d_ff] = w1
    p[W2_OFF:W2_OFF + d_ff, :d_model] = w2
    for b_i in range(B):                                       # block-diagonal conv
        p[WC_OFF + b_i * S: WC_OFF + (b_i + 1) * S, b_i * S:(b_i + 1) * S] = wc
        p[BC_OFF + b_i * S: BC_OFF + (b_i + 1) * S, :1] = bc
    p[BO_OFF, :d_model] = bo[0]
    p[G_OFF, :d_model] = g[0]
    p[BETA_OFF, :d_model] = beta[0]
    p[B1_OFF, :d_ff] = b1[0]
    p[B2_OFF, :d_model] = b2[0]
    return jnp.asarray(p)


def build_attn_bias(mask_f):
    """Additive attention bias over the row-stacked (B*S, B*S) score matrix.

    Diagonal (per-batch) blocks: -1e9 where the user mask is set (matching
    masked_fill(-1e9)), 0 elsewhere.  Cross-batch blocks: -1e30, so the joint
    softmax over 16 keys reduces exactly to the per-batch softmax over 8 keys.
    """
    blocks = jnp.where(mask_f > 0, jnp.float32(-1e9), jnp.float32(0.0))  # (B,S,S)
    bias = jnp.full((BS, BS), jnp.float32(-1e30))
    for b_i in range(B):
        bias = bias.at[b_i * S:(b_i + 1) * S, b_i * S:(b_i + 1) * S].set(blocks[b_i])
    return bias


def encoder_layer(x, mask_f, params):
    wpack = pack_params(params)          # single packed-weight operand
    bias = build_attn_bias(mask_f)       # mask transform hoisted out of the kernel
    x2 = x.reshape(BS, d_model)          # row-stack both batch elements

    vmem = pltpu.MemorySpace.VMEM
    out = pl.pallas_call(
        encoder_layer_kernel,
        out_shape=jax.ShapeDtypeStruct((BS, d_model), jnp.float32),
        in_specs=[pl.BlockSpec(memory_space=vmem)] * 3,      # whole arrays, no grid
        out_specs=pl.BlockSpec(memory_space=vmem),
    )(x2, bias, wpack)
    return out.reshape(B, S, d_model)


def reference(x, mask_f, params):
    """Pure-JAX reference mirroring the PyTorch forward (eval mode)."""
    (wq, bq, wk, bk, wv, bv, wo, bo, g, beta, wc, bc, w1, b1, w2, b2) = params
    q = (x @ wq + bq).reshape(B, S, n_head, d_k).transpose(0, 2, 1, 3)
    k = (x @ wk + bk).reshape(B, S, n_head, d_k).transpose(0, 2, 1, 3)
    v = (x @ wv + bv).reshape(B, S, n_head, d_v).transpose(0, 2, 1, 3)
    scores = jnp.einsum("bhqd,bhkd->bhqk", q, k) / np.sqrt(d_k)
    scores = jnp.where(mask_f[:, None] > 0, -1e9, scores)
    attn = jax.nn.softmax(scores, axis=-1)
    ctx = jnp.einsum("bhqk,bhkd->bhqd", attn, v)
    ctx = ctx.transpose(0, 2, 1, 3).reshape(B, S, n_head * d_v)
    out = ctx @ wo + bo + x
    mean = out.mean(-1, keepdims=True)
    var = ((out - mean) ** 2).mean(-1, keepdims=True)
    out = (out - mean) / jnp.sqrt(var + 1e-5) * g + beta
    out = jnp.einsum("oc,bcl->bol", wc, out) + bc[None]
    out = jnp.maximum(out, 0.0)
    h1 = jnp.maximum(out @ w1 + b1, 0.0)
    return h1 @ w2 + b2


def make_params(key):
    keys = jax.random.split(key, 16)
    sc = 0.1
    wq = sc * jax.random.normal(keys[0], (d_model, n_head * d_k), jnp.float32)
    bq = sc * jax.random.normal(keys[1], (1, n_head * d_k), jnp.float32)
    wk = sc * jax.random.normal(keys[2], (d_model, n_head * d_k), jnp.float32)
    bk = sc * jax.random.normal(keys[3], (1, n_head * d_k), jnp.float32)
    wv = sc * jax.random.normal(keys[4], (d_model, n_head * d_v), jnp.float32)
    bv = sc * jax.random.normal(keys[5], (1, n_head * d_v), jnp.float32)
    wo = sc * jax.random.normal(keys[6], (n_head * d_v, d_model), jnp.float32)
    bo = sc * jax.random.normal(keys[7], (1, d_model), jnp.float32)
    g = jnp.ones((1, d_model), jnp.float32)
    beta = jnp.zeros((1, d_model), jnp.float32)
    wc = sc * jax.random.normal(keys[8], (S, S), jnp.float32)
    bc = sc * jax.random.normal(keys[9], (S, 1), jnp.float32)
    w1 = sc * jax.random.normal(keys[10], (d_model, d_ff), jnp.float32)
    b1 = sc * jax.random.normal(keys[11], (1, d_ff), jnp.float32)
    w2 = sc * jax.random.normal(keys[12], (d_ff, d_model), jnp.float32)
    b2 = sc * jax.random.normal(keys[13], (1, d_model), jnp.float32)
    return (wq, bq, wk, bk, wv, bv, wo, bo, g, beta, wc, bc, w1, b1, w2, b2)


if __name__ == "__main__":
    key = jax.random.PRNGKey(0)
    k_x, k_m, k_p = jax.random.split(key, 3)

    x = jax.random.normal(k_x, (B, S, d_model), jnp.float32)
    # attn_mask: 1.0 means masked; random padding-style mask with an unmasked
    # diagonal so no query row is fully masked (realistic + degeneracy-free).
    mask_f = (jax.random.uniform(k_m, (B, S, S)) < 0.2).astype(jnp.float32)
    mask_f = mask_f * (1.0 - jnp.eye(S, dtype=jnp.float32))
    params = make_params(k_p)

    out = jax.block_until_ready(encoder_layer(x, mask_f, params))

    ref = reference(x, mask_f, params)
    np.testing.assert_allclose(np.asarray(out), np.asarray(ref),
                               rtol=1e-4, atol=1e-4)
    print("KERNEL_OK")
</pallas_src>

<mosaic_0001>
module attributes {stable_mosaic.version = 11 : i64} {
  func.func @encoder_layer_kernel(%arg0: memref<16x32xf32, #tpu.memory_space<vmem>>, %arg1: memref<16x16xf32, #tpu.memory_space<vmem>>, %arg2: memref<568x64xf32, #tpu.memory_space<vmem>>, %arg3: memref<16x32xf32, #tpu.memory_space<vmem>>) attributes {dimension_semantics = [], scalar_prefetch = 0 : i64, scratch_operands = 0 : i64, tpu.core_type = #tpu.core_type<tc>} {
    %c0 = arith.constant 0 : index
    %c0_0 = arith.constant 0 : index
    %0 = vector.load %arg0[%c0, %c0_0] : memref<16x32xf32, #tpu.memory_space<vmem>>, vector<16x32xf32>
    %c0_1 = arith.constant 0 : index
    %c0_2 = arith.constant 0 : index
    %1 = vector.load %arg1[%c0_1, %c0_2] : memref<16x16xf32, #tpu.memory_space<vmem>>, vector<16x16xf32>
    %cst = arith.constant 0.000000e+00 : f32
    %2 = vector.broadcast %cst : f32 to vector<16x32xf32>
    %c0_3 = arith.constant 0 : index
    %c0_4 = arith.constant 0 : index
    %3 = vector.load %arg2[%c0_3, %c0_4] : memref<568x64xf32, #tpu.memory_space<vmem>>, vector<32x8xf32>
    %c128 = arith.constant 128 : index
    %c0_5 = arith.constant 0 : index
    %4 = vector.load %arg2[%c128, %c0_5] : memref<568x64xf32, #tpu.memory_space<vmem>>, vector<32x8xf32>
    %c256 = arith.constant 256 : index
    %c0_6 = arith.constant 0 : index
    %5 = vector.load %arg2[%c256, %c0_6] : memref<568x64xf32, #tpu.memory_space<vmem>>, vector<32x8xf32>
    %c384 = arith.constant 384 : index
    %c0_7 = arith.constant 0 : index
    %6 = vector.load %arg2[%c384, %c0_7] : memref<568x64xf32, #tpu.memory_space<vmem>>, vector<8x32xf32>
    %c544 = arith.constant 544 : index
    %c0_8 = arith.constant 0 : index
    %7 = vector.load %arg2[%c544, %c0_8] : memref<568x64xf32, #tpu.memory_space<vmem>>, vector<1x8xf32>
    %c548 = arith.constant 548 : index
    %c0_9 = arith.constant 0 : index
    %8 = vector.load %arg2[%c548, %c0_9] : memref<568x64xf32, #tpu.memory_space<vmem>>, vector<1x8xf32>
    %c552 = arith.constant 552 : index
    %c0_10 = arith.constant 0 : index
    %9 = vector.load %arg2[%c552, %c0_10] : memref<568x64xf32, #tpu.memory_space<vmem>>, vector<1x8xf32>
    %cst_11 = arith.constant dense<0.000000e+00> : vector<16x8xf32>
    %10 = tpu.matmul %0, %3, %cst_11 {dimension_numbers = #tpu.dot_dimension_numbers<[1], [0], [0], [1], [0, 0, 1, 1], [], []>} : vector<16x32xf32>, vector<32x8xf32>, vector<16x8xf32> -> vector<16x8xf32>
    %11 = vector.broadcast %7 : vector<1x8xf32> to vector<16x8xf32>
    %12 = arith.addf %10, %11 : vector<16x8xf32>
    %cst_12 = arith.constant dense<0.000000e+00> : vector<16x8xf32>
    %13 = tpu.matmul %0, %4, %cst_12 {dimension_numbers = #tpu.dot_dimension_numbers<[1], [0], [0], [1], [0, 0, 1, 1], [], []>} : vector<16x32xf32>, vector<32x8xf32>, vector<16x8xf32> -> vector<16x8xf32>
    %14 = vector.broadcast %8 : vector<1x8xf32> to vector<16x8xf32>
    %15 = arith.addf %13, %14 : vector<16x8xf32>
    %cst_13 = arith.constant dense<0.000000e+00> : vector<16x8xf32>
    %16 = tpu.matmul %0, %5, %cst_13 {dimension_numbers = #tpu.dot_dimension_numbers<[1], [0], [0], [1], [0, 0, 1, 1], [], []>} : vector<16x32xf32>, vector<32x8xf32>, vector<16x8xf32> -> vector<16x8xf32>
    %17 = vector.broadcast %9 : vector<1x8xf32> to vector<16x8xf32>
    %18 = arith.addf %16, %17 : vector<16x8xf32>
    %cst_14 = arith.constant dense<0.000000e+00> : vector<16x16xf32>
    %19 = tpu.matmul %12, %15, %cst_14 {dimension_numbers = #tpu.dot_dimension_numbers<[1], [1], [0], [0], [0, 0, 1, 0], [], []>} : vector<16x8xf32>, vector<16x8xf32>, vector<16x16xf32> -> vector<16x16xf32>
    %20 = arith.addf %19, %1 : vector<16x16xf32>
    %cst_15 = arith.constant dense<0xFF800000> : vector<16xf32>
    %21 = vector.multi_reduction <maximumf>, %20, %cst_15 [1] : vector<16x16xf32> to vector<16xf32>
    %22 = vector.shape_cast %21 : vector<16xf32> to vector<16x1xf32>
    %23 = vector.broadcast %22 : vector<16x1xf32> to vector<16x16xf32>
    %24 = arith.subf %20, %23 : vector<16x16xf32>
    %25 = math.exp %24 : vector<16x16xf32>
    %cst_16 = arith.constant dense<0.000000e+00> : vector<16xf32>
    %26 = vector.multi_reduction <add>, %25, %cst_16 [1] : vector<16x16xf32> to vector<16xf32>
    %27 = vector.shape_cast %26 : vector<16xf32> to vector<16x1xf32>
    %28 = tpu.reciprocal %27 : vector<16x1xf32> -> vector<16x1xf32>
    %29 = vector.broadcast %28 : vector<16x1xf32> to vector<16x16xf32>
    %30 = arith.mulf %25, %29 : vector<16x16xf32>
    %cst_17 = arith.constant dense<0.000000e+00> : vector<16x8xf32>
    %31 = tpu.matmul %30, %18, %cst_17 {dimension_numbers = #tpu.dot_dimension_numbers<[1], [0], [0], [1], [0, 0, 1, 1], [], []>} : vector<16x16xf32>, vector<16x8xf32>, vector<16x8xf32> -> vector<16x8xf32>
    %cst_18 = arith.constant dense<0.000000e+00> : vector<16x32xf32>
    %32 = tpu.matmul %31, %6, %cst_18 {dimension_numbers = #tpu.dot_dimension_numbers<[1], [0], [0], [1], [0, 0, 1, 1], [], []>} : vector<16x8xf32>, vector<8x32xf32>, vector<16x32xf32> -> vector<16x32xf32>
    %33 = arith.addf %2, %32 : vector<16x32xf32>
    %c32 = arith.constant 32 : index
    %c0_19 = arith.constant 0 : index
    %34 = vector.load %arg2[%c32, %c0_19] : memref<568x64xf32, #tpu.memory_space<vmem>>, vector<32x8xf32>
    %c160 = arith.constant 160 : index
    %c0_20 = arith.constant 0 : index
    %35 = vector.load %arg2[%c160, %c0_20] : memref<568x64xf32, #tpu.memory_space<vmem>>, vector<32x8xf32>
    %c288 = arith.constant 288 : index
    %c0_21 = arith.constant 0 : index
    %36 = vector.load %arg2[%c288, %c0_21] : memref<568x64xf32, #tpu.memory_space<vmem>>, vector<32x8xf32>
    %c392 = arith.constant 392 : index
    %c0_22 = arith.constant 0 : index
    %37 = vector.load %arg2[%c392, %c0_22] : memref<568x64xf32, #tpu.memory_space<vmem>>, vector<8x32xf32>
    %c545 = arith.constant 545 : index
    %c0_23 = arith.constant 0 : index
    %38 = vector.load %arg2[%c545, %c0_23] : memref<568x64xf32, #tpu.memory_space<vmem>>, vector<1x8xf32>
    %c549 = arith.constant 549 : index
    %c0_24 = arith.constant 0 : index
    %39 = vector.load %arg2[%c549, %c0_24] : memref<568x64xf32, #tpu.memory_space<vmem>>, vector<1x8xf32>
    %c553 = arith.constant 553 : index
    %c0_25 = arith.constant 0 : index
    %40 = vector.load %arg2[%c553, %c0_25] : memref<568x64xf32, #tpu.memory_space<vmem>>, vector<1x8xf32>
    %cst_26 = arith.constant dense<0.000000e+00> : vector<16x8xf32>
    %41 = tpu.matmul %0, %34, %cst_26 {dimension_numbers = #tpu.dot_dimension_numbers<[1], [0], [0], [1], [0, 0, 1, 1], [], []>} : vector<16x32xf32>, vector<32x8xf32>, vector<16x8xf32> -> vector<16x8xf32>
    %42 = vector.broadcast %38 : vector<1x8xf32> to vector<16x8xf32>
    %43 = arith.addf %41, %42 : vector<16x8xf32>
    %cst_27 = arith.constant dense<0.000000e+00> : vector<16x8xf32>
    %44 = tpu.matmul %0, %35, %cst_27 {dimension_numbers = #tpu.dot_dimension_numbers<[1], [0], [0], [1], [0, 0, 1, 1], [], []>} : vector<16x32xf32>, vector<32x8xf32>, vector<16x8xf32> -> vector<16x8xf32>
    %45 = vector.broadcast %39 : vector<1x8xf32> to vector<16x8xf32>
    %46 = arith.addf %44, %45 : vector<16x8xf32>
    %cst_28 = arith.constant dense<0.000000e+00> : vector<16x8xf32>
    %47 = tpu.matmul %0, %36, %cst_28 {dimension_numbers = #tpu.dot_dimension_numbers<[1], [0], [0], [1], [0, 0, 1, 1], [], []>} : vector<16x32xf32>, vector<32x8xf32>, vector<16x8xf32> -> vector<16x8xf32>
    %48 = vector.broadcast %40 : vector<1x8xf32> to vector<16x8xf32>
    %49 = arith.addf %47, %48 : vector<16x8xf32>
    %cst_29 = arith.constant dense<0.000000e+00> : vector<16x16xf32>
    %50 = tpu.matmul %43, %46, %cst_29 {dimension_numbers = #tpu.dot_dimension_numbers<[1], [1], [0], [0], [0, 0, 1, 0], [], []>} : vector<16x8xf32>, vector<16x8xf32>, vector<16x16xf32> -> vector<16x16xf32>
    %51 = arith.addf %50, %1 : vector<16x16xf32>
    %cst_30 = arith.constant dense<0xFF800000> : vector<16xf32>
    %52 = vector.multi_reduction <maximumf>, %51, %cst_30 [1] : vector<16x16xf32> to vector<16xf32>
    %53 = vector.shape_cast %52 : vector<16xf32> to vector<16x1xf32>
    %54 = vector.broadcast %53 : vector<16x1xf32> to vector<16x16xf32>
    %55 = arith.subf %51, %54 : vector<16x16xf32>
    %56 = math.exp %55 : vector<16x16xf32>
    %cst_31 = arith.constant dense<0.000000e+00> : vector<16xf32>
    %57 = vector.multi_reduction <add>, %56, %cst_31 [1] : vector<16x16xf32> to vector<16xf32>
    %58 = vector.shape_cast %57 : vector<16xf32> to vector<16x1xf32>
    %59 = tpu.reciprocal %58 : vector<16x1xf32> -> vector<16x1xf32>
    %60 = vector.broadcast %59 : vector<16x1xf32> to vector<16x16xf32>
    %61 = arith.mulf %56, %60 : vector<16x16xf32>
    %cst_32 = arith.constant dense<0.000000e+00> : vector<16x8xf32>
    %62 = tpu.matmul %61, %49, %cst_32 {dimension_numbers = #tpu.dot_dimension_numbers<[1], [0], [0], [1], [0, 0, 1, 1], [], []>} : vector<16x16xf32>, vector<16x8xf32>, vector<16x8xf32> -> vector<16x8xf32>
    %cst_33 = arith.constant dense<0.000000e+00> : vector<16x32xf32>
    %63 = tpu.matmul %62, %37, %cst_33 {dimension_numbers = #tpu.dot_dimension_numbers<[1], [0], [0], [1], [0, 0, 1, 1], [], []>} : vector<16x8xf32>, vector<8x32xf32>, vector<16x32xf32> -> vector<16x32xf32>
    %64 = arith.addf %33, %63 : vector<16x32xf32>
    %c64 = arith.constant 64 : index
    %c0_34 = arith.constant 0 : index
    %65 = vector.load %arg2[%c64, %c0_34] : memref<568x64xf32, #tpu.memory_space<vmem>>, vector<32x8xf32>
    %c192 = arith.constant 192 : index
    %c0_35 = arith.constant 0 : index
    %66 = vector.load %arg2[%c192, %c0_35] : memref<568x64xf32, #tpu.memory_space<vmem>>, vector<32x8xf32>
    %c320 = arith.constant 320 : index
    %c0_36 = arith.constant 0 : index
    %67 = vector.load %arg2[%c320, %c0_36] : memref<568x64xf32, #tpu.memory_space<vmem>>, vector<32x8xf32>
    %c400 = arith.constant 400 : index
    %c0_37 = arith.constant 0 : index
    %68 = vector.load %arg2[%c400, %c0_37] : memref<568x64xf32, #tpu.memory_space<vmem>>, vector<8x32xf32>
    %c546 = arith.constant 546 : index
    %c0_38 = arith.constant 0 : index
    %69 = vector.load %arg2[%c546, %c0_38] : memref<568x64xf32, #tpu.memory_space<vmem>>, vector<1x8xf32>
    %c550 = arith.constant 550 : index
    %c0_39 = arith.constant 0 : index
    %70 = vector.load %arg2[%c550, %c0_39] : memref<568x64xf32, #tpu.memory_space<vmem>>, vector<1x8xf32>
    %c554 = arith.constant 554 : index
    %c0_40 = arith.constant 0 : index
    %71 = vector.load %arg2[%c554, %c0_40] : memref<568x64xf32, #tpu.memory_space<vmem>>, vector<1x8xf32>
    %cst_41 = arith.constant dense<0.000000e+00> : vector<16x8xf32>
    %72 = tpu.matmul %0, %65, %cst_41 {dimension_numbers = #tpu.dot_dimension_numbers<[1], [0], [0], [1], [0, 0, 1, 1], [], []>} : vector<16x32xf32>, vector<32x8xf32>, vector<16x8xf32> -> vector<16x8xf32>
    %73 = vector.broadcast %69 : vector<1x8xf32> to vector<16x8xf32>
    %74 = arith.addf %72, %73 : vector<16x8xf32>
    %cst_42 = arith.constant dense<0.000000e+00> : vector<16x8xf32>
    %75 = tpu.matmul %0, %66, %cst_42 {dimension_numbers = #tpu.dot_dimension_numbers<[1], [0], [0], [1], [0, 0, 1, 1], [], []>} : vector<16x32xf32>, vector<32x8xf32>, vector<16x8xf32> -> vector<16x8xf32>
    %76 = vector.broadcast %70 : vector<1x8xf32> to vector<16x8xf32>
    %77 = arith.addf %75, %76 : vector<16x8xf32>
    %cst_43 = arith.constant dense<0.000000e+00> : vector<16x8xf32>
    %78 = tpu.matmul %0, %67, %cst_43 {dimension_numbers = #tpu.dot_dimension_numbers<[1], [0], [0], [1], [0, 0, 1, 1], [], []>} : vector<16x32xf32>, vector<32x8xf32>, vector<16x8xf32> -> vector<16x8xf32>
    %79 = vector.broadcast %71 : vector<1x8xf32> to vector<16x8xf32>
    %80 = arith.addf %78, %79 : vector<16x8xf32>
    %cst_44 = arith.constant dense<0.000000e+00> : vector<16x16xf32>
    %81 = tpu.matmul %74, %77, %cst_44 {dimension_numbers = #tpu.dot_dimension_numbers<[1], [1], [0], [0], [0, 0, 1, 0], [], []>} : vector<16x8xf32>, vector<16x8xf32>, vector<16x16xf32> -> vector<16x16xf32>
    %82 = arith.addf %81, %1 : vector<16x16xf32>
    %cst_45 = arith.constant dense<0xFF800000> : vector<16xf32>
    %83 = vector.multi_reduction <maximumf>, %82, %cst_45 [1] : vector<16x16xf32> to vector<16xf32>
    %84 = vector.shape_cast %83 : vector<16xf32> to vector<16x1xf32>
    %85 = vector.broadcast %84 : vector<16x1xf32> to vector<16x16xf32>
    %86 = arith.subf %82, %85 : vector<16x16xf32>
    %87 = math.exp %86 : vector<16x16xf32>
    %cst_46 = arith.constant dense<0.000000e+00> : vector<16xf32>
    %88 = vector.multi_reduction <add>, %87, %cst_46 [1] : vector<16x16xf32> to vector<16xf32>
    %89 = vector.shape_cast %88 : vector<16xf32> to vector<16x1xf32>
    %90 = tpu.reciprocal %89 : vector<16x1xf32> -> vector<16x1xf32>
    %91 = vector.broadcast %90 : vector<16x1xf32> to vector<16x16xf32>
    %92 = arith.mulf %87, %91 : vector<16x16xf32>
    %cst_47 = arith.constant dense<0.000000e+00> : vector<16x8xf32>
    %93 = tpu.matmul %92, %80, %cst_47 {dimension_numbers = #tpu.dot_dimension_numbers<[1], [0], [0], [1], [0, 0, 1, 1], [], []>} : vector<16x16xf32>, vector<16x8xf32>, vector<16x8xf32> -> vector<16x8xf32>
    %cst_48 = arith.constant dense<0.000000e+00> : vector<16x32xf32>
    %94 = tpu.matmul %93, %68, %cst_48 {dimension_numbers = #tpu.dot_dimension_numbers<[1], [0], [0], [1], [0, 0, 1, 1], [], []>} : vector<16x8xf32>, vector<8x32xf32>, vector<16x32xf32> -> vector<16x32xf32>
    %95 = arith.addf %64, %94 : vector<16x32xf32>
    %c96 = arith.constant 96 : index
    %c0_49 = arith.constant 0 : index
    %96 = vector.load %arg2[%c96, %c0_49] : memref<568x64xf32, #tpu.memory_space<vmem>>, vector<32x8xf32>
    %c224 = arith.constant 224 : index
    %c0_50 = arith.constant 0 : index
    %97 = vector.load %arg2[%c224, %c0_50] : memref<568x64xf32, #tpu.memory_space<vmem>>, vector<32x8xf32>
    %c352 = arith.constant 352 : index
    %c0_51 = arith.constant 0 : index
    %98 = vector.load %arg2[%c352, %c0_51] : memref<568x64xf32, #tpu.memory_space<vmem>>, vector<32x8xf32>
    %c408 = arith.constant 408 : index
    %c0_52 = arith.constant 0 : index
    %99 = vector.load %arg2[%c408, %c0_52] : memref<568x64xf32, #tpu.memory_space<vmem>>, vector<8x32xf32>
    %c547 = arith.constant 547 : index
    %c0_53 = arith.constant 0 : index
    %100 = vector.load %arg2[%c547, %c0_53] : memref<568x64xf32, #tpu.memory_space<vmem>>, vector<1x8xf32>
    %c551 = arith.constant 551 : index
    %c0_54 = arith.constant 0 : index
    %101 = vector.load %arg2[%c551, %c0_54] : memref<568x64xf32, #tpu.memory_space<vmem>>, vector<1x8xf32>
    %c555 = arith.constant 555 : index
    %c0_55 = arith.constant 0 : index
    %102 = vector.load %arg2[%c555, %c0_55] : memref<568x64xf32, #tpu.memory_space<vmem>>, vector<1x8xf32>
    %cst_56 = arith.constant dense<0.000000e+00> : vector<16x8xf32>
    %103 = tpu.matmul %0, %96, %cst_56 {dimension_numbers = #tpu.dot_dimension_numbers<[1], [0], [0], [1], [0, 0, 1, 1], [], []>} : vector<16x32xf32>, vector<32x8xf32>, vector<16x8xf32> -> vector<16x8xf32>
    %104 = vector.broadcast %100 : vector<1x8xf32> to vector<16x8xf32>
    %105 = arith.addf %103, %104 : vector<16x8xf32>
    %cst_57 = arith.constant dense<0.000000e+00> : vector<16x8xf32>
    %106 = tpu.matmul %0, %97, %cst_57 {dimension_numbers = #tpu.dot_dimension_numbers<[1], [0], [0], [1], [0, 0, 1, 1], [], []>} : vector<16x32xf32>, vector<32x8xf32>, vector<16x8xf32> -> vector<16x8xf32>
    %107 = vector.broadcast %101 : vector<1x8xf32> to vector<16x8xf32>
    %108 = arith.addf %106, %107 : vector<16x8xf32>
    %cst_58 = arith.constant dense<0.000000e+00> : vector<16x8xf32>
    %109 = tpu.matmul %0, %98, %cst_58 {dimension_numbers = #tpu.dot_dimension_numbers<[1], [0], [0], [1], [0, 0, 1, 1], [], []>} : vector<16x32xf32>, vector<32x8xf32>, vector<16x8xf32> -> vector<16x8xf32>
    %110 = vector.broadcast %102 : vector<1x8xf32> to vector<16x8xf32>
    %111 = arith.addf %109, %110 : vector<16x8xf32>
    %cst_59 = arith.constant dense<0.000000e+00> : vector<16x16xf32>
    %112 = tpu.matmul %105, %108, %cst_59 {dimension_numbers = #tpu.dot_dimension_numbers<[1], [1], [0], [0], [0, 0, 1, 0], [], []>} : vector<16x8xf32>, vector<16x8xf32>, vector<16x16xf32> -> vector<16x16xf32>
    %113 = arith.addf %112, %1 : vector<16x16xf32>
    %cst_60 = arith.constant dense<0xFF800000> : vector<16xf32>
    %114 = vector.multi_reduction <maximumf>, %113, %cst_60 [1] : vector<16x16xf32> to vector<16xf32>
    %115 = vector.shape_cast %114 : vector<16xf32> to vector<16x1xf32>
    %116 = vector.broadcast %115 : vector<16x1xf32> to vector<16x16xf32>
    %117 = arith.subf %113, %116 : vector<16x16xf32>
    %118 = math.exp %117 : vector<16x16xf32>
    %cst_61 = arith.constant dense<0.000000e+00> : vector<16xf32>
    %119 = vector.multi_reduction <add>, %118, %cst_61 [1] : vector<16x16xf32> to vector<16xf32>
    %120 = vector.shape_cast %119 : vector<16xf32> to vector<16x1xf32>
    %121 = tpu.reciprocal %120 : vector<16x1xf32> -> vector<16x1xf32>
    %122 = vector.broadcast %121 : vector<16x1xf32> to vector<16x16xf32>
    %123 = arith.mulf %118, %122 : vector<16x16xf32>
    %cst_62 = arith.constant dense<0.000000e+00> : vector<16x8xf32>
    %124 = tpu.matmul %123, %111, %cst_62 {dimension_numbers = #tpu.dot_dimension_numbers<[1], [0], [0], [1], [0, 0, 1, 1], [], []>} : vector<16x16xf32>, vector<16x8xf32>, vector<16x8xf32> -> vector<16x8xf32>
    %cst_63 = arith.constant dense<0.000000e+00> : vector<16x32xf32>
    %125 = tpu.matmul %124, %99, %cst_63 {dimension_numbers = #tpu.dot_dimension_numbers<[1], [0], [0], [1], [0, 0, 1, 1], [], []>} : vector<16x8xf32>, vector<8x32xf32>, vector<16x32xf32> -> vector<16x32xf32>
    %126 = arith.addf %95, %125 : vector<16x32xf32>
    %c556 = arith.constant 556 : index
    %c0_64 = arith.constant 0 : index
    %127 = vector.load %arg2[%c556, %c0_64] : memref<568x64xf32, #tpu.memory_space<vmem>>, vector<1x32xf32>
    %128 = vector.broadcast %127 : vector<1x32xf32> to vector<16x32xf32>
    %129 = arith.addf %126, %128 : vector<16x32xf32>
    %130 = arith.addf %129, %0 : vector<16x32xf32>
    %cst_65 = arith.constant dense<0.000000e+00> : vector<16xf32>
    %131 = vector.multi_reduction <add>, %130, %cst_65 [1] : vector<16x32xf32> to vector<16xf32>
    %132 = vector.shape_cast %131 : vector<16xf32> to vector<16x1xf32>
    %cst_66 = arith.constant 3.200000e+01 : f32
    %133 = vector.broadcast %cst_66 : f32 to vector<16x1xf32>
    %134 = arith.divf %132, %133 : vector<16x1xf32>
    %135 = vector.broadcast %134 : vector<16x1xf32> to vector<16x32xf32>
    %136 = arith.subf %130, %135 : vector<16x32xf32>
    %137 = arith.mulf %136, %136 : vector<16x32xf32>
    %cst_67 = arith.constant dense<0.000000e+00> : vector<16xf32>
    %138 = vector.multi_reduction <add>, %137, %cst_67 [1] : vector<16x32xf32> to vector<16xf32>
    %139 = vector.shape_cast %138 : vector<16xf32> to vector<16x1xf32>
    %cst_68 = arith.constant 3.200000e+01 : f32
    %140 = vector.broadcast %cst_68 : f32 to vector<16x1xf32>
    %141 = arith.divf %139, %140 : vector<16x1xf32>
    %142 = vector.broadcast %134 : vector<16x1xf32> to vector<16x32xf32>
    %143 = arith.subf %130, %142 : vector<16x32xf32>
    %cst_69 = arith.constant 9.99999974E-6 : f32
    %144 = vector.broadcast %cst_69 : f32 to vector<16x1xf32>
    %145 = arith.addf %141, %144 : vector<16x1xf32>
    %146 = math.rsqrt %145 : vector<16x1xf32>
    %147 = vector.broadcast %146 : vector<16x1xf32> to vector<16x32xf32>
    %148 = arith.mulf %143, %147 : vector<16x32xf32>
    %c557 = arith.constant 557 : index
    %c0_70 = arith.constant 0 : index
    %149 = vector.load %arg2[%c557, %c0_70] : memref<568x64xf32, #tpu.memory_space<vmem>>, vector<1x32xf32>
    %150 = vector.broadcast %149 : vector<1x32xf32> to vector<16x32xf32>
    %151 = arith.mulf %148, %150 : vector<16x32xf32>
    %c558 = arith.constant 558 : index
    %c0_71 = arith.constant 0 : index
    %152 = vector.load %arg2[%c558, %c0_71] : memref<568x64xf32, #tpu.memory_space<vmem>>, vector<1x32xf32>
    %153 = vector.broadcast %152 : vector<1x32xf32> to vector<16x32xf32>
    %154 = arith.addf %151, %153 : vector<16x32xf32>
    %c512 = arith.constant 512 : index
    %c0_72 = arith.constant 0 : index
    %155 = vector.load %arg2[%c512, %c0_72] : memref<568x64xf32, #tpu.memory_space<vmem>>, vector<16x16xf32>
    %cst_73 = arith.constant dense<0.000000e+00> : vector<16x32xf32>
    %156 = tpu.matmul %155, %154, %cst_73 {dimension_numbers = #tpu.dot_dimension_numbers<[1], [0], [0], [1], [0, 0, 1, 1], [], []>} : vector<16x16xf32>, vector<16x32xf32>, vector<16x32xf32> -> vector<16x32xf32>
    %c528 = arith.constant 528 : index
    %c0_74 = arith.constant 0 : index
    %157 = vector.load %arg2[%c528, %c0_74] : memref<568x64xf32, #tpu.memory_space<vmem>>, vector<16x1xf32>
    %158 = vector.broadcast %157 : vector<16x1xf32> to vector<16x32xf32>
    %159 = arith.addf %156, %158 : vector<16x32xf32>
    %cst_75 = arith.constant 0.000000e+00 : f32
    %160 = vector.broadcast %cst_75 : f32 to vector<16x32xf32>
    %161 = arith.maximumf %159, %160 : vector<16x32xf32>
    %c416 = arith.constant 416 : index
    %c0_76 = arith.constant 0 : index
    %162 = vector.load %arg2[%c416, %c0_76] : memref<568x64xf32, #tpu.memory_space<vmem>>, vector<32x64xf32>
    %cst_77 = arith.constant dense<0.000000e+00> : vector<16x64xf32>
    %163 = tpu.matmul %161, %162, %cst_77 {dimension_numbers = #tpu.dot_dimension_numbers<[1], [0], [0], [1], [0, 0, 1, 1], [], []>} : vector<16x32xf32>, vector<32x64xf32>, vector<16x64xf32> -> vector<16x64xf32>
    %c559 = arith.constant 559 : index
    %c0_78 = arith.constant 0 : index
    %164 = vector.load %arg2[%c559, %c0_78] : memref<568x64xf32, #tpu.memory_space<vmem>>, vector<1x64xf32>
    %165 = vector.broadcast %164 : vector<1x64xf32> to vector<16x64xf32>
    %166 = arith.addf %163, %165 : vector<16x64xf32>
    %cst_79 = arith.constant 0.000000e+00 : f32
    %167 = vector.broadcast %cst_79 : f32 to vector<16x64xf32>
    %168 = arith.maximumf %166, %167 : vector<16x64xf32>
    %c448 = arith.constant 448 : index
    %c0_80 = arith.constant 0 : index
    %169 = vector.load %arg2[%c448, %c0_80] : memref<568x64xf32, #tpu.memory_space<vmem>>, vector<64x32xf32>
    %cst_81 = arith.constant dense<0.000000e+00> : vector<16x32xf32>
    %170 = tpu.matmul %168, %169, %cst_81 {dimension_numbers = #tpu.dot_dimension_numbers<[1], [0], [0], [1], [0, 0, 1, 1], [], []>} : vector<16x64xf32>, vector<64x32xf32>, vector<16x32xf32> -> vector<16x32xf32>
    %c560 = arith.constant 560 : index
    %c0_82 = arith.constant 0 : index
    %171 = vector.load %arg2[%c560, %c0_82] : memref<568x64xf32, #tpu.memory_space<vmem>>, vector<1x32xf32>
    %172 = vector.broadcast %171 : vector<1x32xf32> to vector<16x32xf32>
    %173 = arith.addf %170, %172 : vector<16x32xf32>
    %c0_83 = arith.constant 0 : index
    %c0_84 = arith.constant 0 : index
    %174 = vector.load %arg3[%c0_83, %c0_84] : memref<16x32xf32, #tpu.memory_space<vmem>>, vector<16x32xf32>
    tpu.vector_store %arg3[%c0_83, %c0_84], %173 {strides = array<i32>} : memref<16x32xf32, #tpu.memory_space<vmem>>, vector<16x32xf32>,
    return
  }
}

</mosaic_0001>

<llo_original>
// kernel: tpu_custom_call.1
$region0: #{tpu_custom_call.1}
  #allocation0 [shape = 'u32[]', space=smem, size = 0x4, offset = 0x4, fixed_abs, tag = 'smem constant byte address 0x4 - core index']
  #allocation1 [shape = 'u32[72,128]{1,0:T(1,128)}', space=vmem, size = 0x9000, scoped, tag = 'internal scratch']
  %s0 = inlined_call_operand.vmem [shape: f32[16,32], index: 0, kind: input, shape index: {}]
  %s1 = inlined_call_operand.vmem [shape: f32[16,16], index: 1, kind: input, shape index: {}]
  %s2 = inlined_call_operand.vmem [shape: f32[568,64], index: 2, kind: input, shape index: {}]
  %s3 = inlined_call_operand.hbm [shape: f32[16,32], index: 3, kind: output, shape index: {}]
  %s4 = sld [smem:[#allocation0]]
  $region22: #{tpu_custom_call.1} parent=0
    _
  %s6 = ssub.s32 1, %s4
  %s7 = scalar_select 0, %s6, %s4
  $region1: #{tpu_custom_call.1} parent=0
    #allocation2 [shape = 'u8[8192]{0}', space=vmem, size = 0x2000, scoped, tag = 'output window, operand 0, single buffered']
    #allocation3 [shape = 's32[1]{0}', space=sflag, size = 0x4, scoped, tag = 'scoped memory for tpu_custom_call.1']
    %8 = vsyncpa [#allocation3], 0
    // Predicated region
    $region2: #{tpu_custom_call.1} parent=1 // pred_check
      _
    $region3: #{tpu_custom_call.1} parent=1 // pred_check_branch
      %10 = sbr.rel (0) target = $region5
    $region4: #{tpu_custom_call.1} parent=1 // pred_region
      _
    $region5: #{tpu_custom_call.1} parent=1 // pred_fallthru
      _
    // Predicated region
    $region6: #{tpu_custom_call.1} parent=1 // pred_check
      _
    $region7: #{tpu_custom_call.1} parent=1 // pred_check_branch
      %12 = sbr.rel (0) target = $region9
    $region8: #{tpu_custom_call.1} parent=1 // pred_region
      _
    $region9: #{tpu_custom_call.1} parent=1 // pred_fallthru
      _
    // Predicated region
    $region10: #{tpu_custom_call.1} parent=1 // pred_check
      _
    $region11: #{tpu_custom_call.1} parent=1 // pred_check_branch
      %14 = sbr.rel (0) target = $region13
    $region12: #{tpu_custom_call.1} parent=1 // pred_region
      _
    $region13: #{tpu_custom_call.1} parent=1 // pred_fallthru
      _
    %v15 = vld [vmem:[%s0] sm:$0xff]
    %v16 = vld [vmem:[%s0 + $0x8] sm:$0xff]
    %v17 = vld [vmem:[%s1] sm:$0xff]
    %v18 = vld [vmem:[%s1 + $0x8] sm:$0xff]
    %v19 = vld [vmem:[%s2] sm:$0xff]
    %v20 = vld [vmem:[%s2 + $0x8] sm:$0xff]
    %v21 = vld [vmem:[%s2 + $0x10] sm:$0xff]
    %v22 = vld [vmem:[%s2 + $0x18] sm:$0xff]
    %v23 = vld [vmem:[%s2 + $0x80] sm:$0xff]
    %v24 = vld [vmem:[%s2 + $0x88] sm:$0xff]
    %v25 = vld [vmem:[%s2 + $0x90] sm:$0xff]
    %v26 = vld [vmem:[%s2 + $0x98] sm:$0xff]
    %v27 = vld [vmem:[%s2 + $0x100] sm:$0xff]
    %v28 = vld [vmem:[%s2 + $0x108] sm:$0xff]
    %v29 = vld [vmem:[%s2 + $0x110] sm:$0xff]
    %v30 = vld [vmem:[%s2 + $0x118] sm:$0xff]
    %v31 = vld [vmem:[%s2 + $0x180] sm:$0xff]
    %v32 = vld [vmem:[%s2 + $0x220] sm:$0x1]
    %v33 = vld [vmem:[%s2 + $0x224] sm:$0x1]
    %v34 = vld [vmem:[%s2 + $0x228] sm:$0x1]
    %v35 = vperm.slane %v32, 0
    %vm36 = vcmask 261120
    %v38 = vsel %vm36, %v15, 0
    %v41 = vsel %vm36, %v16, 0
    %43 = vmatpush.msra.mxu0 0.0
    %44 = vmatpush.msra.mxu0 0.0
    %45 = vmatpush.msra.mxu0 0.0
    %46 = vmatpush.msra.mxu0 0.0
    %47 = vmatpush.msra.mxu0 0.0
    %48 = vmatpush.msra.mxu0 0.0
    %49 = vmatpush.msra.mxu0 0.0
    %50 = vmatpush.msra.mxu0 0.0
    %51 = vmatpush.msra.mxu0 0.0
    %52 = vmatpush.msra.mxu0 0.0
    %53 = vmatpush.msra.mxu0 0.0
    %54 = vmatpush.msra.mxu0 0.0
    %55 = vmatpush.msra.mxu0 %v22
    %56 = vmatpush.msra.mxu0 %v21
    %57 = vmatpush.msra.mxu0 %v20
    %58 = vmatpush.msra.mxu0 %v19
    %59 = vmatmul.f32.gmra.mxu0 %v38
    %v60 = vpop.f32.mrf.mxu0
    %v61 = vadd.f32 %v35, %v60
    %62 = vmatmul.f32.gmra.mxu0 %v41
    %v63 = vpop.f32.mrf.mxu0
    %v64 = vadd.f32 %v35, %v63
    %65 = vdwg.mxu0
    %v66 = vperm.slane %v33, 0
    %67 = vmatpush.msra.mxu0 0.0
    %68 = vmatpush.msra.mxu0 0.0
    %69 = vmatpush.msra.mxu0 0.0
    %70 = vmatpush.msra.mxu0 0.0
    %71 = vmatpush.msra.mxu0 0.0
    %72 = vmatpush.msra.mxu0 0.0
    %73 = vmatpush.msra.mxu0 0.0
    %74 = vmatpush.msra.mxu0 0.0
    %75 = vmatpush.msra.mxu0 0.0
    %76 = vmatpush.msra.mxu0 0.0
    %77 = vmatpush.msra.mxu0 0.0
    %78 = vmatpush.msra.mxu0 0.0
    %79 = vmatpush.msra.mxu0 %v26
    %80 = vmatpush.msra.mxu0 %v25
    %81 = vmatpush.msra.mxu0 %v24
    %82 = vmatpush.msra.mxu0 %v23
    %83 = vmatmul.f32.gmra.mxu0 %v38
    %v84 = vpop.f32.mrf.mxu0
    %v85 = vadd.f32 %v66, %v84
    %86 = vmatmul.f32.gmra.mxu0 %v41
    %v87 = vpop.f32.mrf.mxu0
    %v88 = vadd.f32 %v66, %v87
    %89 = vdwg.mxu0
    %v90 = vperm.slane %v34, 0
    %91 = vmatpush.msra.mxu0 0.0
    %92 = vmatpush.msra.mxu0 0.0
    %93 = vmatpush.msra.mxu0 0.0
    %94 = vmatpush.msra.mxu0 0.0
    %95 = vmatpush.msra.mxu0 0.0
    %96 = vmatpush.msra.mxu0 0.0
    %97 = vmatpush.msra.mxu0 0.0
    %98 = vmatpush.msra.mxu0 0.0
    %99 = vmatpush.msra.mxu0 0.0
    %100 = vmatpush.msra.mxu0 0.0
    %101 = vmatpush.msra.mxu0 0.0
    %102 = vmatpush.msra.mxu0 0.0
    %103 = vmatpush.msra.mxu0 %v30
    %104 = vmatpush.msra.mxu0 %v29
    %105 = vmatpush.msra.mxu0 %v28
    %106 = vmatpush.msra.mxu0 %v27
    %107 = vmatmul.f32.gmra.mxu0 %v38
    %v108 = vpop.f32.mrf.mxu0
    %v109 = vadd.f32 %v90, %v108
    %110 = vmatmul.f32.gmra.mxu0 %v41
    %v111 = vpop.f32.mrf.mxu0
    %v112 = vadd.f32 %v90, %v111
    %113 = vdwg.mxu0
    %vm114 = vcmask 64512
    %v116 = vsel %vm114, %v61, 0
    %v119 = vsel %vm114, %v64, 0
    %v122 = vsel %vm114, %v85, 0
    %v125 = vsel %vm114, %v88, 0
    %127 = vmatpush.xpose.msra.mxu0 0.0
    %128 = vmatpush.xpose.msra.mxu0 0.0
    %129 = vmatpush.xpose.msra.mxu0 0.0
    %130 = vmatpush.xpose.msra.mxu0 0.0
    %131 = vmatpush.xpose.msra.mxu0 0.0
    %132 = vmatpush.xpose.msra.mxu0 0.0
    %133 = vmatpush.xpose.msra.mxu0 0.0
    %134 = vmatpush.xpose.msra.mxu0 0.0
    %135 = vmatpush.xpose.msra.mxu0 0.0
    %136 = vmatpush.xpose.msra.mxu0 0.0
    %137 = vmatpush.xpose.msra.mxu0 0.0
    %138 = vmatpush.xpose.msra.mxu0 0.0
    %139 = vmatpush.xpose.msra.mxu0 0.0
    %140 = vmatpush.xpose.msra.mxu0 0.0
    %141 = vmatpush.xpose.msra.mxu0 %v125
    %142 = vmatpush.xpose.msra.mxu0 %v122
    %143 = vmatmul.f32.gmra.mxu0 %v116
    %v144 = vpop.f32.mrf.mxu0
    %v145 = vadd.f32 %v17, %v144
    %146 = vmatmul.f32.gmra.mxu0 %v119
    %v147 = vpop.f32.mrf.mxu0
    %v148 = vadd.f32 %v18, %v147
    %149 = vdwg.mxu0
    %vm150 = vcmask 130048
    %v151 = vsel %vm150, %v145, -inf
    %152 = vmax.xlane.f32.xlu0 %v151
    %v153 = vpop.xlane.xlu0 %152
    %v154 = vsel %vm150, %v148, -inf
    %155 = vmax.xlane.f32.xlu0 %v154
    %v156 = vpop.xlane.xlu0 %155
    %v157 = vsub.f32 %v145, %v153
    %v158 = vsub.f32 %v148, %v156
    %v159 = vmul.f32 %v157, 1.442695
    %v160 = vpow.pop %v159
    %v161 = vmul.f32 %v158, 1.442695
    %v162 = vpow.pop %v161
    %v163 = vsel %vm150, %v160, 0.0
    %164 = vadd.xlane.f32.xlu0 %v163
    %v165 = vpop.xlane.xlu0 %164
    %v166 = vsel %vm150, %v162, 0.0
    %167 = vadd.xlane.f32.xlu0 %v166
    %v168 = vpop.xlane.xlu0 %167
    %v169 = vrcp.pop %v165
    %v170 = vmul.f32 %v165, %v169
    %v171 = vsub.f32 1.0, %v170
    %v172 = vmul.f32 %v169, %v171
    %v173 = vadd.f32 %v169, %v172
    %vm174 = vweird.f32 %v165
    %vm175 = vweird.f32 %v169
    %vm176 = vmor %vm174, %vm175
    %v177 = vsel %vm176, %v169, %v173
    %v178 = vand.u32 2147483647, %v165
    %vm179 = vcmp.eq.f32.partialorder %v178, 8.507059e+37
    %v180 = vand.u32 %v165, 2147483648
    %v181 = vor.u32 1.1754944e-38, %v180
    %v182 = vsel %vm179, %v181, %v177
    %v183 = vrcp.pop %v168
    %v184 = vmul.f32 %v168, %v183
    %v185 = vsub.f32 1.0, %v184
    %v186 = vmul.f32 %v183, %v185
    %v187 = vadd.f32 %v183, %v186
    %vm188 = vweird.f32 %v168
    %vm189 = vweird.f32 %v183
    %vm190 = vmor %vm188, %vm189
    %v191 = vsel %vm190, %v183, %v187
    %v192 = vand.u32 2147483647, %v168
    %vm193 = vcmp.eq.f32.partialorder %v192, 8.507059e+37
    %v194 = vand.u32 %v168, 2147483648
    %v195 = vor.u32 1.1754944e-38, %v194
    %v196 = vsel %vm193, %v195, %v191
    %v197 = vmul.f32 %v160, %v182
    %v198 = vmul.f32 %v162, %v196
    %v200 = vsel %vm150, %v197, 0
    %v203 = vsel %vm150, %v198, 0
    %205 = vmatpush.msra.mxu0 0.0
    %206 = vmatpush.msra.mxu0 0.0
    %207 = vmatpush.msra.mxu0 0.0
    %208 = vmatpush.msra.mxu0 0.0
    %209 = vmatpush.msra.mxu0 0.0
    %210 = vmatpush.msra.mxu0 0.0
    %211 = vmatpush.msra.mxu0 0.0
    %212 = vmatpush.msra.mxu0 0.0
    %213 = vmatpush.msra.mxu0 0.0
    %214 = vmatpush.msra.mxu0 0.0
    %215 = vmatpush.msra.mxu0 0.0
    %216 = vmatpush.msra.mxu0 0.0
    %217 = vmatpush.msra.mxu0 0.0
    %218 = vmatpush.msra.mxu0 0.0
    %219 = vmatpush.msra.mxu0 %v112
    %220 = vmatpush.msra.mxu0 %v109
    %221 = vmatmul.f32.gmra.mxu0 %v200
    %v222 = vpop.f32.mrf.mxu0
    %v223 = vadd.f32 0.0, %v222
    %224 = vmatmul.f32.gmra.mxu0 %v203
    %v225 = vpop.f32.mrf.mxu0
    %v226 = vadd.f32 0.0, %v225
    %227 = vdwg.mxu0
    %v228 = vld [vmem:[%s2 + $0x20] sm:$0xff]
    %v229 = vld [vmem:[%s2 + $0x28] sm:$0xff]
    %v230 = vld [vmem:[%s2 + $0x30] sm:$0xff]
    %v231 = vld [vmem:[%s2 + $0x38] sm:$0xff]
    %v232 = vld [vmem:[%s2 + $0xa0] sm:$0xff]
    %v233 = vld [vmem:[%s2 + $0xa8] sm:$0xff]
    %v234 = vld [vmem:[%s2 + $0xb0] sm:$0xff]
    %v235 = vld [vmem:[%s2 + $0xb8] sm:$0xff]
    %v236 = vld [vmem:[%s2 + $0x120] sm:$0xff]
    %v237 = vld [vmem:[%s2 + $0x128] sm:$0xff]
    %v238 = vld [vmem:[%s2 + $0x130] sm:$0xff]
    %v239 = vld [vmem:[%s2 + $0x138] sm:$0xff]
    %v240 = vld [vmem:[%s2 + $0x188] sm:$0xff]
    %v241 = vld [vmem:[%s2 + $0x221] sm:$0x1]
    %v242 = vld [vmem:[%s2 + $0x225] sm:$0x1]
    %v243 = vld [vmem:[%s2 + $0x229] sm:$0x1]
    %v244 = vperm.slane %v241, 0
    %245 = vmatpush.msra.mxu0 0.0
    %246 = vmatpush.msra.mxu0 0.0
    %247 = vmatpush.msra.mxu0 0.0
    %248 = vmatpush.msra.mxu0 0.0
    %249 = vmatpush.msra.mxu0 0.0
    %250 = vmatpush.msra.mxu0 0.0
    %251 = vmatpush.msra.mxu0 0.0
    %252 = vmatpush.msra.mxu0 0.0
    %253 = vmatpush.msra.mxu0 0.0
    %254 = vmatpush.msra.mxu0 0.0
    %255 = vmatpush.msra.mxu0 0.0
    %256 = vmatpush.msra.mxu0 0.0
    %257 = vmatpush.msra.mxu0 %v231
    %258 = vmatpush.msra.mxu0 %v230
    %259 = vmatpush.msra.mxu0 %v229
    %260 = vmatpush.msra.mxu0 %v228
    %261 = vmatmul.f32.gmra.mxu0 %v38
    %v262 = vpop.f32.mrf.mxu0
    %v263 = vadd.f32 %v244, %v262
    %264 = vmatmul.f32.gmra.mxu0 %v41
    %v265 = vpop.f32.mrf.mxu0
    %v266 = vadd.f32 %v244, %v265
    %267 = vdwg.mxu0
    %v268 = vperm.slane %v242, 0
    %269 = vmatpush.msra.mxu0 0.0
    %270 = vmatpush.msra.mxu0 0.0
    %271 = vmatpush.msra.mxu0 0.0
    %272 = vmatpush.msra.mxu0 0.0
    %273 = vmatpush.msra.mxu0 0.0
    %274 = vmatpush.msra.mxu0 0.0
    %275 = vmatpush.msra.mxu0 0.0
    %276 = vmatpush.msra.mxu0 0.0
    %277 = vmatpush.msra.mxu0 0.0
    %278 = vmatpush.msra.mxu0 0.0
    %279 = vmatpush.msra.mxu0 0.0
    %280 = vmatpush.msra.mxu0 0.0
    %281 = vmatpush.msra.mxu0 %v235
    %282 = vmatpush.msra.mxu0 %v234
    %283 = vmatpush.msra.mxu0 %v233
    %284 = vmatpush.msra.mxu0 %v232
    %285 = vmatmul.f32.gmra.mxu0 %v38
    %v286 = vpop.f32.mrf.mxu0
    %v287 = vadd.f32 %v268, %v286
    %288 = vmatmul.f32.gmra.mxu0 %v41
    %v289 = vpop.f32.mrf.mxu0
    %v290 = vadd.f32 %v268, %v289
    %291 = vdwg.mxu0
    %v292 = vperm.slane %v243, 0
    %293 = vmatpush.msra.mxu0 0.0
    %294 = vmatpush.msra.mxu0 0.0
    %295 = vmatpush.msra.mxu0 0.0
    %296 = vmatpush.msra.mxu0 0.0
    %297 = vmatpush.msra.mxu0 0.0
    %298 = vmatpush.msra.mxu0 0.0
    %299 = vmatpush.msra.mxu0 0.0
    %300 = vmatpush.msra.mxu0 0.0
    %301 = vmatpush.msra.mxu0 0.0
    %302 = vmatpush.msra.mxu0 0.0
    %303 = vmatpush.msra.mxu0 0.0
    %304 = vmatpush.msra.mxu0 0.0
    %305 = vmatpush.msra.mxu0 %v239
    %306 = vmatpush.msra.mxu0 %v238
    %307 = vmatpush.msra.mxu0 %v237
    %308 = vmatpush.msra.mxu0 %v236
    %309 = vmatmul.f32.gmra.mxu0 %v38
    %v310 = vpop.f32.mrf.mxu0
    %v311 = vadd.f32 %v292, %v310
    %312 = vmatmul.f32.gmra.mxu0 %v41
    %v313 = vpop.f32.mrf.mxu0
    %v314 = vadd.f32 %v292, %v313
    %315 = vdwg.mxu0
    %v317 = vsel %vm114, %v263, 0
    %v320 = vsel %vm114, %v266, 0
    %v323 = vsel %vm114, %v287, 0
    %v326 = vsel %vm114, %v290, 0
    %328 = vmatpush.xpose.msra.mxu0 0.0
    %329 = vmatpush.xpose.msra.mxu0 0.0
    %330 = vmatpush.xpose.msra.mxu0 0.0
    %331 = vmatpush.xpose.msra.mxu0 0.0
    %332 = vmatpush.xpose.msra.mxu0 0.0
    %333 = vmatpush.xpose.msra.mxu0 0.0
    %334 = vmatpush.xpose.msra.mxu0 0.0
    %335 = vmatpush.xpose.msra.mxu0 0.0
    %336 = vmatpush.xpose.msra.mxu0 0.0
    %337 = vmatpush.xpose.msra.mxu0 0.0
    %338 = vmatpush.xpose.msra.mxu0 0.0
    %339 = vmatpush.xpose.msra.mxu0 0.0
    %340 = vmatpush.xpose.msra.mxu0 0.0
    %341 = vmatpush.xpose.msra.mxu0 0.0
    %342 = vmatpush.xpose.msra.mxu0 %v326
    %343 = vmatpush.xpose.msra.mxu0 %v323
    %344 = vmatmul.f32.gmra.mxu0 %v317
    %v345 = vpop.f32.mrf.mxu0
    %v346 = vadd.f32 %v17, %v345
    %347 = vmatmul.f32.gmra.mxu0 %v320
    %v348 = vpop.f32.mrf.mxu0
    %v349 = vadd.f32 %v18, %v348
    %350 = vdwg.mxu0
    %v351 = vsel %vm150, %v346, -inf
    %352 = vmax.xlane.f32.xlu0 %v351
    %v353 = vpop.xlane.xlu0 %352
    %v354 = vsel %vm150, %v349, -inf
    %355 = vmax.xlane.f32.xlu0 %v354
    %v356 = vpop.xlane.xlu0 %355
    %v357 = vsub.f32 %v346, %v353
    %v358 = vsub.f32 %v349, %v356
    %v359 = vmul.f32 %v357, 1.442695
    %v360 = vpow.pop %v359
    %v361 = vmul.f32 %v358, 1.442695
    %v362 = vpow.pop %v361
    %v363 = vsel %vm150, %v360, 0.0
    %364 = vadd.xlane.f32.xlu0 %v363
    %v365 = vpop.xlane.xlu0 %364
    %v366 = vsel %vm150, %v362, 0.0
    %367 = vadd.xlane.f32.xlu0 %v366
    %v368 = vpop.xlane.xlu0 %367
    %v369 = vrcp.pop %v365
    %v370 = vmul.f32 %v365, %v369
    %v371 = vsub.f32 1.0, %v370
    %v372 = vmul.f32 %v369, %v371
    %v373 = vadd.f32 %v369, %v372
    %vm374 = vweird.f32 %v365
    %vm375 = vweird.f32 %v369
    %vm376 = vmor %vm374, %vm375
    %v377 = vsel %vm376, %v369, %v373
    %v378 = vand.u32 2147483647, %v365
    %vm379 = vcmp.eq.f32.partialorder %v378, 8.507059e+37
    %v380 = vand.u32 %v365, 2147483648
    %v381 = vor.u32 1.1754944e-38, %v380
    %v382 = vsel %vm379, %v381, %v377
    %v383 = vrcp.pop %v368
    %v384 = vmul.f32 %v368, %v383
    %v385 = vsub.f32 1.0, %v384
    %v386 = vmul.f32 %v383, %v385
    %v387 = vadd.f32 %v383, %v386
    %vm388 = vweird.f32 %v368
    %vm389 = vweird.f32 %v383
    %vm390 = vmor %vm388, %vm389
    %v391 = vsel %vm390, %v383, %v387
    %v392 = vand.u32 2147483647, %v368
    %vm393 = vcmp.eq.f32.partialorder %v392, 8.507059e+37
    %v394 = vand.u32 %v368, 2147483648
    %v395 = vor.u32 1.1754944e-38, %v394
    %v396 = vsel %vm393, %v395, %v391
    %v397 = vmul.f32 %v360, %v382
    %v398 = vmul.f32 %v362, %v396
    %v400 = vsel %vm150, %v397, 0
    %v403 = vsel %vm150, %v398, 0
    %405 = vmatpush.msra.mxu0 0.0
    %406 = vmatpush.msra.mxu0 0.0
    %407 = vmatpush.msra.mxu0 0.0
    %408 = vmatpush.msra.mxu0 0.0
    %409 = vmatpush.msra.mxu0 0.0
    %410 = vmatpush.msra.mxu0 0.0
    %411 = vmatpush.msra.mxu0 0.0
    %412 = vmatpush.msra.mxu0 0.0
    %413 = vmatpush.msra.mxu0 0.0
    %414 = vmatpush.msra.mxu0 0.0
    %415 = vmatpush.msra.mxu0 0.0
    %416 = vmatpush.msra.mxu0 0.0
    %417 = vmatpush.msra.mxu0 0.0
    %418 = vmatpush.msra.mxu0 0.0
    %419 = vmatpush.msra.mxu0 %v314
    %420 = vmatpush.msra.mxu0 %v311
    %421 = vmatmul.f32.gmra.mxu0 %v400
    %v422 = vpop.f32.mrf.mxu0
    %v423 = vadd.f32 0.0, %v422
    %424 = vmatmul.f32.gmra.mxu0 %v403
    %v425 = vpop.f32.mrf.mxu0
    %v426 = vadd.f32 0.0, %v425
    %427 = vdwg.mxu0
    %v429 = vsel %vm114, %v423, 0
    %v432 = vsel %vm114, %v426, 0
    %434 = vmatpush.msra.mxu0 0.0
    %435 = vmatpush.msra.mxu0 0.0
    %436 = vmatpush.msra.mxu0 0.0
    %437 = vmatpush.msra.mxu0 0.0
    %438 = vmatpush.msra.mxu0 0.0
    %439 = vmatpush.msra.mxu0 0.0
    %440 = vmatpush.msra.mxu0 0.0
    %441 = vmatpush.msra.mxu0 0.0
    %442 = vmatpush.msra.mxu0 0.0
    %443 = vmatpush.msra.mxu0 0.0
    %444 = vmatpush.msra.mxu0 0.0
    %445 = vmatpush.msra.mxu0 0.0
    %446 = vmatpush.msra.mxu0 0.0
    %447 = vmatpush.msra.mxu0 0.0
    %448 = vmatpush.msra.mxu0 0.0
    %449 = vmatpush.msra.mxu0 %v240
    %450 = vmatmul.f32.gmra.mxu0 %v429
    %v451 = vpop.f32.mrf.mxu0
    %v452 = vadd.f32 0.0, %v451
    %453 = vmatmul.f32.gmra.mxu0 %v432
    %v454 = vpop.f32.mrf.mxu0
    %v455 = vadd.f32 0.0, %v454
    %456 = vdwg.mxu0
    %v458 = vsel %vm114, %v223, 0
    %v461 = vsel %vm114, %v226, 0
    %463 = vmatpush.msra.mxu0 0.0
    %464 = vmatpush.msra.mxu0 0.0
    %465 = vmatpush.msra.mxu0 0.0
    %466 = vmatpush.msra.mxu0 0.0
    %467 = vmatpush.msra.mxu0 0.0
    %468 = vmatpush.msra.mxu0 0.0
    %469 = vmatpush.msra.mxu0 0.0
    %470 = vmatpush.msra.mxu0 0.0
    %471 = vmatpush.msra.mxu0 0.0
    %472 = vmatpush.msra.mxu0 0.0
    %473 = vmatpush.msra.mxu0 0.0
    %474 = vmatpush.msra.mxu0 0.0
    %475 = vmatpush.msra.mxu0 0.0
    %476 = vmatpush.msra.mxu0 0.0
    %477 = vmatpush.msra.mxu0 0.0
    %478 = vmatpush.msra.mxu0 %v31
    %479 = vmatmul.f32.gmra.mxu0 %v458
    %v480 = vpop.f32.mrf.mxu0
    %v481 = vadd.f32 %v452, %v480
    %482 = vmatmul.f32.gmra.mxu0 %v461
    %v483 = vpop.f32.mrf.mxu0
    %v484 = vadd.f32 %v455, %v483
    %485 = vdwg.mxu0
    %v486 = vld [vmem:[%s2 + $0x40] sm:$0xff]
    %v487 = vld [vmem:[%s2 + $0x48] sm:$0xff]
    %v488 = vld [vmem:[%s2 + $0x50] sm:$0xff]
    %v489 = vld [vmem:[%s2 + $0x58] sm:$0xff]
    %v490 = vld [vmem:[%s2 + $0xc0] sm:$0xff]
    %v491 = vld [vmem:[%s2 + $0xc8] sm:$0xff]
    %v492 = vld [vmem:[%s2 + $0xd0] sm:$0xff]
    %v493 = vld [vmem:[%s2 + $0xd8] sm:$0xff]
    %v494 = vld [vmem:[%s2 + $0x140] sm:$0xff]
    %v495 = vld [vmem:[%s2 + $0x148] sm:$0xff]
    %v496 = vld [vmem:[%s2 + $0x150] sm:$0xff]
    %v497 = vld [vmem:[%s2 + $0x158] sm:$0xff]
    %v498 = vld [vmem:[%s2 + $0x190] sm:$0xff]
    %v499 = vld [vmem:[%s2 + $0x222] sm:$0x1]
    %v500 = vld [vmem:[%s2 + $0x226] sm:$0x1]
    %v501 = vld [vmem:[%s2 + $0x22a] sm:$0x1]
    %v502 = vperm.slane %v499, 0
    %503 = vmatpush.msra.mxu0 0.0
    %504 = vmatpush.msra.mxu0 0.0
    %505 = vmatpush.msra.mxu0 0.0
    %506 = vmatpush.msra.mxu0 0.0
    %507 = vmatpush.msra.mxu0 0.0
    %508 = vmatpush.msra.mxu0 0.0
    %509 = vmatpush.msra.mxu0 0.0
    %510 = vmatpush.msra.mxu0 0.0
    %511 = vmatpush.msra.mxu0 0.0
    %512 = vmatpush.msra.mxu0 0.0
    %513 = vmatpush.msra.mxu0 0.0
    %514 = vmatpush.msra.mxu0 0.0
    %515 = vmatpush.msra.mxu0 %v489
    %516 = vmatpush.msra.mxu0 %v488
    %517 = vmatpush.msra.mxu0 %v487
    %518 = vmatpush.msra.mxu0 %v486
    %519 = vmatmul.f32.gmra.mxu0 %v38
    %v520 = vpop.f32.mrf.mxu0
    %v521 = vadd.f32 %v502, %v520
    %522 = vmatmul.f32.gmra.mxu0 %v41
    %v523 = vpop.f32.mrf.mxu0
    %v524 = vadd.f32 %v502, %v523
    %525 = vdwg.mxu0
    %v526 = vperm.slane %v500, 0
    %527 = vmatpush.msra.mxu0 0.0
    %528 = vmatpush.msra.mxu0 0.0
    %529 = vmatpush.msra.mxu0 0.0
    %530 = vmatpush.msra.mxu0 0.0
    %531 = vmatpush.msra.mxu0 0.0
    %532 = vmatpush.msra.mxu0 0.0
    %533 = vmatpush.msra.mxu0 0.0
    %534 = vmatpush.msra.mxu0 0.0
    %535 = vmatpush.msra.mxu0 0.0
    %536 = vmatpush.msra.mxu0 0.0
    %537 = vmatpush.msra.mxu0 0.0
    %538 = vmatpush.msra.mxu0 0.0
    %539 = vmatpush.msra.mxu0 %v493
    %540 = vmatpush.msra.mxu0 %v492
    %541 = vmatpush.msra.mxu0 %v491
    %542 = vmatpush.msra.mxu0 %v490
    %543 = vmatmul.f32.gmra.mxu0 %v38
    %v544 = vpop.f32.mrf.mxu0
    %v545 = vadd.f32 %v526, %v544
    %546 = vmatmul.f32.gmra.mxu0 %v41
    %v547 = vpop.f32.mrf.mxu0
    %v548 = vadd.f32 %v526, %v547
    %549 = vdwg.mxu0
    %v550 = vperm.slane %v501, 0
    %551 = vmatpush.msra.mxu0 0.0
    %552 = vmatpush.msra.mxu0 0.0
    %553 = vmatpush.msra.mxu0 0.0
    %554 = vmatpush.msra.mxu0 0.0
    %555 = vmatpush.msra.mxu0 0.0
    %556 = vmatpush.msra.mxu0 0.0
    %557 = vmatpush.msra.mxu0 0.0
    %558 = vmatpush.msra.mxu0 0.0
    %559 = vmatpush.msra.mxu0 0.0
    %560 = vmatpush.msra.mxu0 0.0
    %561 = vmatpush.msra.mxu0 0.0
    %562 = vmatpush.msra.mxu0 0.0
    %563 = vmatpush.msra.mxu0 %v497
    %564 = vmatpush.msra.mxu0 %v496
    %565 = vmatpush.msra.mxu0 %v495
    %566 = vmatpush.msra.mxu0 %v494
    %567 = vmatmul.f32.gmra.mxu0 %v38
    %v568 = vpop.f32.mrf.mxu0
    %v569 = vadd.f32 %v550, %v568
    %570 = vmatmul.f32.gmra.mxu0 %v41
    %v571 = vpop.f32.mrf.mxu0
    %v572 = vadd.f32 %v550, %v571
    %573 = vdwg.mxu0
    %v575 = vsel %vm114, %v521, 0
    %v578 = vsel %vm114, %v524, 0
    %v581 = vsel %vm114, %v545, 0
    %v584 = vsel %vm114, %v548, 0
    %586 = vmatpush.xpose.msra.mxu0 0.0
    %587 = vmatpush.xpose.msra.mxu0 0.0
    %588 = vmatpush.xpose.msra.mxu0 0.0
    %589 = vmatpush.xpose.msra.mxu0 0.0
    %590 = vmatpush.xpose.msra.mxu0 0.0
    %591 = vmatpush.xpose.msra.mxu0 0.0
    %592 = vmatpush.xpose.msra.mxu0 0.0
    %593 = vmatpush.xpose.msra.mxu0 0.0
    %594 = vmatpush.xpose.msra.mxu0 0.0
    %595 = vmatpush.xpose.msra.mxu0 0.0
    %596 = vmatpush.xpose.msra.mxu0 0.0
    %597 = vmatpush.xpose.msra.mxu0 0.0
    %598 = vmatpush.xpose.msra.mxu0 0.0
    %599 = vmatpush.xpose.msra.mxu0 0.0
    %600 = vmatpush.xpose.msra.mxu0 %v584
    %601 = vmatpush.xpose.msra.mxu0 %v581
    %602 = vmatmul.f32.gmra.mxu0 %v575
    %v603 = vpop.f32.mrf.mxu0
    %v604 = vadd.f32 %v17, %v603
    %605 = vmatmul.f32.gmra.mxu0 %v578
    %v606 = vpop.f32.mrf.mxu0
    %v607 = vadd.f32 %v18, %v606
    %608 = vdwg.mxu0
    %v609 = vsel %vm150, %v604, -inf
    %610 = vmax.xlane.f32.xlu0 %v609
    %v611 = vpop.xlane.xlu0 %610
    %v612 = vsel %vm150, %v607, -inf
    %613 = vmax.xlane.f32.xlu0 %v612
    %v614 = vpop.xlane.xlu0 %613
    %v615 = vsub.f32 %v604, %v611
    %v616 = vsub.f32 %v607, %v614
    %v617 = vmul.f32 %v615, 1.442695
    %v618 = vpow.pop %v617
    %v619 = vmul.f32 %v616, 1.442695
    %v620 = vpow.pop %v619
    %v621 = vsel %vm150, %v618, 0.0
    %622 = vadd.xlane.f32.xlu0 %v621
    %v623 = vpop.xlane.xlu0 %622
    %v624 = vsel %vm150, %v620, 0.0
    %625 = vadd.xlane.f32.xlu0 %v624
    %v626 = vpop.xlane.xlu0 %625
    %v627 = vrcp.pop %v623
    %v628 = vmul.f32 %v623, %v627
    %v629 = vsub.f32 1.0, %v628
    %v630 = vmul.f32 %v627, %v629
    %v631 = vadd.f32 %v627, %v630
    %vm632 = vweird.f32 %v623
    %vm633 = vweird.f32 %v627
    %vm634 = vmor %vm632, %vm633
    %v635 = vsel %vm634, %v627, %v631
    %v636 = vand.u32 2147483647, %v623
    %vm637 = vcmp.eq.f32.partialorder %v636, 8.507059e+37
    %v638 = vand.u32 %v623, 2147483648
    %v639 = vor.u32 1.1754944e-38, %v638
    %v640 = vsel %vm637, %v639, %v635
    %v641 = vrcp.pop %v626
    %v642 = vmul.f32 %v626, %v641
    %v643 = vsub.f32 1.0, %v642
    %v644 = vmul.f32 %v641, %v643
    %v645 = vadd.f32 %v641, %v644
    %vm646 = vweird.f32 %v626
    %vm647 = vweird.f32 %v641
    %vm648 = vmor %vm646, %vm647
    %v649 = vsel %vm648, %v641, %v645
    %v650 = vand.u32 2147483647, %v626
    %vm651 = vcmp.eq.f32.partialorder %v650, 8.507059e+37
    %v652 = vand.u32 %v626, 2147483648
    %v653 = vor.u32 1.1754944e-38, %v652
    %v654 = vsel %vm651, %v653, %v649
    %v655 = vmul.f32 %v618, %v640
    %v656 = vmul.f32 %v620, %v654
    %v658 = vsel %vm150, %v655, 0
    %v661 = vsel %vm150, %v656, 0
    %663 = vmatpush.msra.mxu0 0.0
    %664 = vmatpush.msra.mxu0 0.0
    %665 = vmatpush.msra.mxu0 0.0
    %666 = vmatpush.msra.mxu0 0.0
    %667 = vmatpush.msra.mxu0 0.0
    %668 = vmatpush.msra.mxu0 0.0
    %669 = vmatpush.msra.mxu0 0.0
    %670 = vmatpush.msra.mxu0 0.0
    %671 = vmatpush.msra.mxu0 0.0
    %672 = vmatpush.msra.mxu0 0.0
    %673 = vmatpush.msra.mxu0 0.0
    %674 = vmatpush.msra.mxu0 0.0
    %675 = vmatpush.msra.mxu0 0.0
    %676 = vmatpush.msra.mxu0 0.0
    %677 = vmatpush.msra.mxu0 %v572
    %678 = vmatpush.msra.mxu0 %v569
    %679 = vmatmul.f32.gmra.mxu0 %v658
    %v680 = vpop.f32.mrf.mxu0
    %v681 = vadd.f32 0.0, %v680
    %682 = vmatmul.f32.gmra.mxu0 %v661
    %v683 = vpop.f32.mrf.mxu0
    %v684 = vadd.f32 0.0, %v683
    %685 = vdwg.mxu0
    %v687 = vsel %vm114, %v681, 0
    %v690 = vsel %vm114, %v684, 0
    %692 = vmatpush.msra.mxu0 0.0
    %693 = vmatpush.msra.mxu0 0.0
    %694 = vmatpush.msra.mxu0 0.0
    %695 = vmatpush.msra.mxu0 0.0
    %696 = vmatpush.msra.mxu0 0.0
    %697 = vmatpush.msra.mxu0 0.0
    %698 = vmatpush.msra.mxu0 0.0
    %699 = vmatpush.msra.mxu0 0.0
    %700 = vmatpush.msra.mxu0 0.0
    %701 = vmatpush.msra.mxu0 0.0
    %702 = vmatpush.msra.mxu0 0.0
    %703 = vmatpush.msra.mxu0 0.0
    %704 = vmatpush.msra.mxu0 0.0
    %705 = vmatpush.msra.mxu0 0.0
    %706 = vmatpush.msra.mxu0 0.0
    %707 = vmatpush.msra.mxu0 %v498
    %708 = vmatmul.f32.gmra.mxu0 %v687
    %v709 = vpop.f32.mrf.mxu0
    %v710 = vadd.f32 0.0, %v709
    %711 = vmatmul.f32.gmra.mxu0 %v690
    %v712 = vpop.f32.mrf.mxu0
    %v713 = vadd.f32 0.0, %v712
    %714 = vdwg.mxu0
    %v715 = vadd.f32 %v481, %v710
    %v716 = vadd.f32 %v484, %v713
    %v717 = vld [vmem:[%s2 + $0x60] sm:$0xff]
    %v718 = vld [vmem:[%s2 + $0x68] sm:$0xff]
    %v719 = vld [vmem:[%s2 + $0x70] sm:$0xff]
    %v720 = vld [vmem:[%s2 + $0x78] sm:$0xff]
    %v721 = vld [vmem:[%s2 + $0xe0] sm:$0xff]
    %v722 = vld [vmem:[%s2 + $0xe8] sm:$0xff]
    %v723 = vld [vmem:[%s2 + $0xf0] sm:$0xff]
    %v724 = vld [vmem:[%s2 + $0xf8] sm:$0xff]
    %v725 = vld [vmem:[%s2 + $0x160] sm:$0xff]
    %v726 = vld [vmem:[%s2 + $0x168] sm:$0xff]
    %v727 = vld [vmem:[%s2 + $0x170] sm:$0xff]
    %v728 = vld [vmem:[%s2 + $0x178] sm:$0xff]
    %v729 = vld [vmem:[%s2 + $0x198] sm:$0xff]
    %v730 = vld [vmem:[%s2 + $0x223] sm:$0x1]
    %v731 = vld [vmem:[%s2 + $0x227] sm:$0x1]
    %v732 = vld [vmem:[%s2 + $0x22b] sm:$0x1]
    %v733 = vperm.slane %v730, 0
    %734 = vmatpush.msra.mxu0 0.0
    %735 = vmatpush.msra.mxu0 0.0
    %736 = vmatpush.msra.mxu0 0.0
    %737 = vmatpush.msra.mxu0 0.0
    %738 = vmatpush.msra.mxu0 0.0
    %739 = vmatpush.msra.mxu0 0.0
    %740 = vmatpush.msra.mxu0 0.0
    %741 = vmatpush.msra.mxu0 0.0
    %742 = vmatpush.msra.mxu0 0.0
    %743 = vmatpush.msra.mxu0 0.0
    %744 = vmatpush.msra.mxu0 0.0
    %745 = vmatpush.msra.mxu0 0.0
    %746 = vmatpush.msra.mxu0 %v720
    %747 = vmatpush.msra.mxu0 %v719
    %748 = vmatpush.msra.mxu0 %v718
    %749 = vmatpush.msra.mxu0 %v717
    %750 = vmatmul.f32.gmra.mxu0 %v38
    %v751 = vpop.f32.mrf.mxu0
    %v752 = vadd.f32 %v733, %v751
    %753 = vmatmul.f32.gmra.mxu0 %v41
    %v754 = vpop.f32.mrf.mxu0
    %v755 = vadd.f32 %v733, %v754
    %756 = vdwg.mxu0
    %v757 = vperm.slane %v731, 0
    %758 = vmatpush.msra.mxu0 0.0
    %759 = vmatpush.msra.mxu0 0.0
    %760 = vmatpush.msra.mxu0 0.0
    %761 = vmatpush.msra.mxu0 0.0
    %762 = vmatpush.msra.mxu0 0.0
    %763 = vmatpush.msra.mxu0 0.0
    %764 = vmatpush.msra.mxu0 0.0
    %765 = vmatpush.msra.mxu0 0.0
    %766 = vmatpush.msra.mxu0 0.0
    %767 = vmatpush.msra.mxu0 0.0
    %768 = vmatpush.msra.mxu0 0.0
    %769 = vmatpush.msra.mxu0 0.0
    %770 = vmatpush.msra.mxu0 %v724
    %771 = vmatpush.msra.mxu0 %v723
    %772 = vmatpush.msra.mxu0 %v722
    %773 = vmatpush.msra.mxu0 %v721
    %774 = vmatmul.f32.gmra.mxu0 %v38
    %v775 = vpop.f32.mrf.mxu0
    %v776 = vadd.f32 %v757, %v775
    %777 = vmatmul.f32.gmra.mxu0 %v41
    %v778 = vpop.f32.mrf.mxu0
    %v779 = vadd.f32 %v757, %v778
    %780 = vdwg.mxu0
    %v781 = vperm.slane %v732, 0
    %782 = vmatpush.msra.mxu0 0.0
    %783 = vmatpush.msra.mxu0 0.0
    %784 = vmatpush.msra.mxu0 0.0
    %785 = vmatpush.msra.mxu0 0.0
    %786 = vmatpush.msra.mxu0 0.0
    %787 = vmatpush.msra.mxu0 0.0
    %788 = vmatpush.msra.mxu0 0.0
    %789 = vmatpush.msra.mxu0 0.0
    %790 = vmatpush.msra.mxu0 0.0
    %791 = vmatpush.msra.mxu0 0.0
    %792 = vmatpush.msra.mxu0 0.0
    %793 = vmatpush.msra.mxu0 0.0
    %794 = vmatpush.msra.mxu0 %v728
    %795 = vmatpush.msra.mxu0 %v727
    %796 = vmatpush.msra.mxu0 %v726
    %797 = vmatpush.msra.mxu0 %v725
    %798 = vmatmul.f32.gmra.mxu0 %v38
    %v799 = vpop.f32.mrf.mxu0
    %v800 = vadd.f32 %v781, %v799
    %801 = vmatmul.f32.gmra.mxu0 %v41
    %v802 = vpop.f32.mrf.mxu0
    %v803 = vadd.f32 %v781, %v802
    %804 = vdwg.mxu0
    %v806 = vsel %vm114, %v752, 0
    %v809 = vsel %vm114, %v755, 0
    %v812 = vsel %vm114, %v776, 0
    %v815 = vsel %vm114, %v779, 0
    %817 = vmatpush.xpose.msra.mxu0 0.0
    %818 = vmatpush.xpose.msra.mxu0 0.0
    %819 = vmatpush.xpose.msra.mxu0 0.0
    %820 = vmatpush.xpose.msra.mxu0 0.0
    %821 = vmatpush.xpose.msra.mxu0 0.0
    %822 = vmatpush.xpose.msra.mxu0 0.0
    %823 = vmatpush.xpose.msra.mxu0 0.0
    %824 = vmatpush.xpose.msra.mxu0 0.0
    %825 = vmatpush.xpose.msra.mxu0 0.0
    %826 = vmatpush.xpose.msra.mxu0 0.0
    %827 = vmatpush.xpose.msra.mxu0 0.0
    %828 = vmatpush.xpose.msra.mxu0 0.0
    %829 = vmatpush.xpose.msra.mxu0 0.0
    %830 = vmatpush.xpose.msra.mxu0 0.0
    %831 = vmatpush.xpose.msra.mxu0 %v815
    %832 = vmatpush.xpose.msra.mxu0 %v812
    %833 = vmatmul.f32.gmra.mxu0 %v806
    %v834 = vpop.f32.mrf.mxu0
    %v835 = vadd.f32 %v17, %v834
    %836 = vmatmul.f32.gmra.mxu0 %v809
    %v837 = vpop.f32.mrf.mxu0
    %v838 = vadd.f32 %v18, %v837
    %839 = vdwg.mxu0
    %v840 = vsel %vm150, %v835, -inf
    %841 = vmax.xlane.f32.xlu0 %v840
    %v842 = vpop.xlane.xlu0 %841
    %v843 = vsel %vm150, %v838, -inf
    %844 = vmax.xlane.f32.xlu0 %v843
    %v845 = vpop.xlane.xlu0 %844
    %v846 = vsub.f32 %v835, %v842
    %v847 = vsub.f32 %v838, %v845
    %v848 = vmul.f32 %v846, 1.442695
    %v849 = vpow.pop %v848
    %v850 = vmul.f32 %v847, 1.442695
    %v851 = vpow.pop %v850
    %v852 = vsel %vm150, %v849, 0.0
    %853 = vadd.xlane.f32.xlu0 %v852
    %v854 = vpop.xlane.xlu0 %853
    %v855 = vsel %vm150, %v851, 0.0
    %856 = vadd.xlane.f32.xlu0 %v855
    %v857 = vpop.xlane.xlu0 %856
    %v858 = vrcp.pop %v854
    %v859 = vmul.f32 %v854, %v858
    %v860 = vsub.f32 1.0, %v859
    %v861 = vmul.f32 %v858, %v860
    %v862 = vadd.f32 %v858, %v861
    %vm863 = vweird.f32 %v854
    %vm864 = vweird.f32 %v858
    %vm865 = vmor %vm863, %vm864
    %v866 = vsel %vm865, %v858, %v862
    %v867 = vand.u32 2147483647, %v854
    %vm868 = vcmp.eq.f32.partialorder %v867, 8.507059e+37
    %v869 = vand.u32 %v854, 2147483648
    %v870 = vor.u32 1.1754944e-38, %v869
    %v871 = vsel %vm868, %v870, %v866
    %v872 = vrcp.pop %v857
    %v873 = vmul.f32 %v857, %v872
    %v874 = vsub.f32 1.0, %v873
    %v875 = vmul.f32 %v872, %v874
    %v876 = vadd.f32 %v872, %v875
    %vm877 = vweird.f32 %v857
    %vm878 = vweird.f32 %v872
    %vm879 = vmor %vm877, %vm878
    %v880 = vsel %vm879, %v872, %v876
    %v881 = vand.u32 2147483647, %v857
    %vm882 = vcmp.eq.f32.partialorder %v881, 8.507059e+37
    %v883 = vand.u32 %v857, 2147483648
    %v884 = vor.u32 1.1754944e-38, %v883
    %v885 = vsel %vm882, %v884, %v880
    %v886 = vmul.f32 %v849, %v871
    %v887 = vmul.f32 %v851, %v885
    %v889 = vsel %vm150, %v886, 0
    %v892 = vsel %vm150, %v887, 0
    %894 = vmatpush.msra.mxu0 0.0
    %895 = vmatpush.msra.mxu0 0.0
    %896 = vmatpush.msra.mxu0 0.0
    %897 = vmatpush.msra.mxu0 0.0
    %898 = vmatpush.msra.mxu0 0.0
    %899 = vmatpush.msra.mxu0 0.0
    %900 = vmatpush.msra.mxu0 0.0
    %901 = vmatpush.msra.mxu0 0.0
    %902 = vmatpush.msra.mxu0 0.0
    %903 = vmatpush.msra.mxu0 0.0
    %904 = vmatpush.msra.mxu0 0.0
    %905 = vmatpush.msra.mxu0 0.0
    %906 = vmatpush.msra.mxu0 0.0
    %907 = vmatpush.msra.mxu0 0.0
    %908 = vmatpush.msra.mxu0 %v803
    %909 = vmatpush.msra.mxu0 %v800
    %910 = vmatmul.f32.gmra.mxu0 %v889
    %v911 = vpop.f32.mrf.mxu0
    %v912 = vadd.f32 0.0, %v911
    %913 = vmatmul.f32.gmra.mxu0 %v892
    %v914 = vpop.f32.mrf.mxu0
    %v915 = vadd.f32 0.0, %v914
    %916 = vdwg.mxu0
    %v918 = vsel %vm114, %v912, 0
    %v921 = vsel %vm114, %v915, 0
    %923 = vmatpush.msra.mxu0 0.0
    %924 = vmatpush.msra.mxu0 0.0
    %925 = vmatpush.msra.mxu0 0.0
    %926 = vmatpush.msra.mxu0 0.0
    %927 = vmatpush.msra.mxu0 0.0
    %928 = vmatpush.msra.mxu0 0.0
    %929 = vmatpush.msra.mxu0 0.0
    %930 = vmatpush.msra.mxu0 0.0
    %931 = vmatpush.msra.mxu0 0.0
    %932 = vmatpush.msra.mxu0 0.0
    %933 = vmatpush.msra.mxu0 0.0
    %934 = vmatpush.msra.mxu0 0.0
    %935 = vmatpush.msra.mxu0 0.0
    %936 = vmatpush.msra.mxu0 0.0
    %937 = vmatpush.msra.mxu0 0.0
    %938 = vmatpush.msra.mxu0 %v729
    %939 = vmatmul.f32.gmra.mxu0 %v918
    %v940 = vpop.f32.mrf.mxu0
    %v941 = vadd.f32 0.0, %v940
    %942 = vmatmul.f32.gmra.mxu0 %v921
    %v943 = vpop.f32.mrf.mxu0
    %v944 = vadd.f32 0.0, %v943
    %945 = vdwg.mxu0
    %v946 = vadd.f32 %v715, %v941
    %v947 = vadd.f32 %v716, %v944
    %v948 = vld [vmem:[%s2 + $0x22c] sm:$0x1]
    %v949 = vperm.slane %v948, 0
    %v950 = vadd.f32 %v946, %v949
    %v951 = vadd.f32 %v947, %v949
    %v952 = vadd.f32 %v950, %v15
    %v953 = vadd.f32 %v951, %v16
    %v954 = vsel %vm36, %v952, 0.0
    %955 = vadd.xlane.f32.xlu0 %v954
    %v956 = vpop.xlane.xlu0 %955
    %v957 = vsel %vm36, %v953, 0.0
    %958 = vadd.xlane.f32.xlu0 %v957
    %v959 = vpop.xlane.xlu0 %958
    %v960 = vrcp.pop 32.0
    %v961 = vmul.f32 32.0, %v960
    %v962 = vsub.f32 1.0, %v961
    %v963 = vmul.f32 %v960, %v962
    %v964 = vadd.f32 %v960, %v963
    %vm965 = vweird.f32 %v960
    %v966 = vsel %vm965, %v960, %v964
    %v967 = vmul.f32 %v956, %v966
    %v968 = vmul.f32 %v959, %v966
    %v969 = vsub.f32 %v952, %v967
    %v970 = vsub.f32 %v953, %v968
    %v971 = vmul.f32 %v969, %v969
    %v972 = vmul.f32 %v970, %v970
    %v973 = vsel %vm36, %v971, 0.0
    %974 = vadd.xlane.f32.xlu0 %v973
    %v975 = vpop.xlane.xlu0 %974
    %v976 = vsel %vm36, %v972, 0.0
    %977 = vadd.xlane.f32.xlu0 %v976
    %v978 = vpop.xlane.xlu0 %977
    %v979 = vmul.f32 %v975, %v966
    %v980 = vmul.f32 %v978, %v966
    %v981 = vadd.f32 %v979, 1e-05
    %v982 = vadd.f32 %v980, 1e-05
    %v983 = vrsqrt.pop %v981
    %v984 = vmul.f32 %v983, %v981
    %v985 = vmul.f32 %v984, %v983
    %v986 = vmul.f32 0.5, %v985
    %v987 = vsub.f32 1.5, %v986
    %v988 = vmul.f32 %v983, %v987
    %vm989 = vweird.f32 %v981
    %vm990 = vweird.f32 %v983
    %vm991 = vmor %vm989, %vm990
    %v992 = vsel %vm991, %v983, %v988
    %v993 = vrsqrt.pop %v982
    %v994 = vmul.f32 %v993, %v982
    %v995 = vmul.f32 %v994, %v993
    %v996 = vmul.f32 0.5, %v995
    %v997 = vsub.f32 1.5, %v996
    %v998 = vmul.f32 %v993, %v997
    %vm999 = vweird.f32 %v982
    %vm1000 = vweird.f32 %v993
    %vm1001 = vmor %vm999, %vm1000
    %v1002 = vsel %vm1001, %v993, %v998
    %v1003 = vmul.f32 %v969, %v992
    %v1004 = vmul.f32 %v970, %v1002
    %v1005 = vld [vmem:[%s2 + $0x22d] sm:$0x1]
    %v1006 = vperm.slane %v1005, 0
    %v1007 = vmul.f32 %v1003, %v1006
    %v1008 = vmul.f32 %v1004, %v1006
    %v1009 = vld [vmem:[%s2 + $0x22e] sm:$0x1]
    %v1010 = vperm.slane %v1009, 0
    %v1011 = vadd.f32 %v1007, %v1010
    %v1012 = vadd.f32 %v1008, %v1010
    %v1013 = vld [vmem:[%s2 + $0x200] sm:$0xff]
    %v1014 = vld [vmem:[%s2 + $0x208] sm:$0xff]
    %v1015 = vld [vmem:[%s2 + $0x210] sm:$0xff]
    %v1016 = vld [vmem:[%s2 + $0x218] sm:$0xff]
    %1018 = vset.pattern.permute.xlu0 0
    %1019 = vperm.xlu0 %1018, %v1015
    %v1020 = vpop.permute.xlu0 %1019
    %1023 = vset.pattern.permute.xlu0 0
    %1024 = vperm.xlu0 %1023, %v1016
    %v1025 = vpop.permute.xlu0 %1024
    %v1028 = vsel %vm150, %v1013, 0
    %v1031 = vsel %vm150, %v1014, 0
    %1033 = vmatpush.msra.mxu0 0.0
    %1034 = vmatpush.msra.mxu0 0.0
    %1035 = vmatpush.msra.mxu0 0.0
    %1036 = vmatpush.msra.mxu0 0.0
    %1037 = vmatpush.msra.mxu0 0.0
    %1038 = vmatpush.msra.mxu0 0.0
    %1039 = vmatpush.msra.mxu0 0.0
    %1040 = vmatpush.msra.mxu0 0.0
    %1041 = vmatpush.msra.mxu0 0.0
    %1042 = vmatpush.msra.mxu0 0.0
    %1043 = vmatpush.msra.mxu0 0.0
    %1044 = vmatpush.msra.mxu0 0.0
    %1045 = vmatpush.msra.mxu0 0.0
    %1046 = vmatpush.msra.mxu0 0.0
    %1047 = vmatpush.msra.mxu0 %v1012
    %1048 = vmatpush.msra.mxu0 %v1011
    %1049 = vmatmul.f32.gmra.mxu0 %v1028
    %v1050 = vpop.f32.mrf.mxu0
    %v1051 = vadd.f32 %v1020, %v1050
    %1052 = vmatmul.f32.gmra.mxu0 %v1031
    %v1053 = vpop.f32.mrf.mxu0
    %v1054 = vadd.f32 %v1025, %v1053
    %1055 = vdwg.mxu0
    %v1056 = vmax.f32 %v1051, 0.0
    %v1057 = vmax.f32 %v1054, 0.0
    %v1058 = vld [vmem:[%s2 + $0x1a0] sm:$0xff]
    %v1059 = vld [vmem:[%s2 + $0x1a8] sm:$0xff]
    %v1060 = vld [vmem:[%s2 + $0x1b0] sm:$0xff]
    %v1061 = vld [vmem:[%s2 + $0x1b8] sm:$0xff]
    %v1062 = vld [vmem:[%s2 + $0x22f] sm:$0x1]
    %v1063 = vperm.slane %v1062, 0
    %v1065 = vsel %vm36, %v1056, 0
    %v1068 = vsel %vm36, %v1057, 0
    %1070 = vmatpush.msra.mxu0 0.0
    %1071 = vmatpush.msra.mxu0 0.0
    %1072 = vmatpush.msra.mxu0 0.0
    %1073 = vmatpush.msra.mxu0 0.0
    %1074 = vmatpush.msra.mxu0 0.0
    %1075 = vmatpush.msra.mxu0 0.0
    %1076 = vmatpush.msra.mxu0 0.0
    %1077 = vmatpush.msra.mxu0 0.0
    %1078 = vmatpush.msra.mxu0 0.0
    %1079 = vmatpush.msra.mxu0 0.0
    %1080 = vmatpush.msra.mxu0 0.0
    %1081 = vmatpush.msra.mxu0 0.0
    %1082 = vmatpush.msra.mxu0 %v1061
    %1083 = vmatpush.msra.mxu0 %v1060
    %1084 = vmatpush.msra.mxu0 %v1059
    %1085 = vmatpush.msra.mxu0 %v1058
    %1086 = vmatmul.f32.gmra.mxu0 %v1065
    %v1087 = vpop.f32.mrf.mxu0
    %v1088 = vadd.f32 %v1063, %v1087
    %1089 = vmatmul.f32.gmra.mxu0 %v1068
    %v1090 = vpop.f32.mrf.mxu0
    %v1091 = vadd.f32 %v1063, %v1090
    %1092 = vdwg.mxu0
    %v1093 = vmax.f32 %v1088, 0.0
    %v1094 = vmax.f32 %v1091, 0.0
    %v1095 = vld [vmem:[%s2 + $0x1c0] sm:$0xff]
    %v1096 = vld [vmem:[%s2 + $0x1c8] sm:$0xff]
    %v1097 = vld [vmem:[%s2 + $0x1d0] sm:$0xff]
    %v1098 = vld [vmem:[%s2 + $0x1d8] sm:$0xff]
    %v1099 = vld [vmem:[%s2 + $0x1e0] sm:$0xff]
    %v1100 = vld [vmem:[%s2 + $0x1e8] sm:$0xff]
    %v1101 = vld [vmem:[%s2 + $0x1f0] sm:$0xff]
    %v1102 = vld [vmem:[%s2 + $0x1f8] sm:$0xff]
    %v1103 = vld [vmem:[%s2 + $0x230] sm:$0x1]
    %v1104 = vperm.slane %v1103, 0
    %vm1105 = vcmask 523264
    %v1107 = vsel %vm1105, %v1093, 0
    %v1110 = vsel %vm1105, %v1094, 0
    %1112 = vmatpush.msra.mxu0 0.0
    %1113 = vmatpush.msra.mxu0 0.0
    %1114 = vmatpush.msra.mxu0 0.0
    %1115 = vmatpush.msra.mxu0 0.0
    %1116 = vmatpush.msra.mxu0 0.0
    %1117 = vmatpush.msra.mxu0 0.0
    %1118 = vmatpush.msra.mxu0 0.0
    %1119 = vmatpush.msra.mxu0 0.0
    %1120 = vmatpush.msra.mxu0 %v1102
    %1121 = vmatpush.msra.mxu0 %v1101
    %1122 = vmatpush.msra.mxu0 %v1100
    %1123 = vmatpush.msra.mxu0 %v1099
    %1124 = vmatpush.msra.mxu0 %v1098
    %1125 = vmatpush.msra.mxu0 %v1097
    %1126 = vmatpush.msra.mxu0 %v1096
    %1127 = vmatpush.msra.mxu0 %v1095
    %1128 = vmatmul.f32.gmra.mxu0 %v1107
    %v1129 = vpop.f32.mrf.mxu0
    %v1130 = vadd.f32 %v1104, %v1129
    %1131 = vmatmul.f32.gmra.mxu0 %v1110
    %v1132 = vpop.f32.mrf.mxu0
    %v1133 = vadd.f32 %v1104, %v1132
    %1134 = vdwg.mxu0
    %1135 = vst.msk [vmem:[#allocation2] sm:$0xff] %vm36, %v1130
    %1136 = vst.msk [vmem:[#allocation2 + $0x8] sm:$0xff] %vm36, %v1133
    // Predicated region
    $region14: #{tpu_custom_call.1} parent=1 // pred_check
      _
    $region15: #{tpu_custom_call.1} parent=1 // pred_check_branch
      %1138 = sbr.rel (0) target = $region17
    $region16: #{tpu_custom_call.1} parent=1 // pred_region
      %1140 = vsyncadd [#allocation3], 0
      %s1141 = sshll.u32 [#allocation2], 4
      %s1142 = int_to_ptr.vmem [resolvable:$true] %s1141
      %s1143 = sshll.u32 %s3, 4
      %s1144 = int_to_ptr.hbm [resolvable:$true] %s1143
      %1149 = dma.vmem_to_hbm [thread:$0]  %s1142, 256, %s1144, [#allocation3], 128, 128, 8
    $region17: #{tpu_custom_call.1} parent=1 // pred_fallthru
      _
    // Predicated region
    $region18: #{tpu_custom_call.1} parent=1 // pred_check
      _
    $region19: #{tpu_custom_call.1} parent=1 // pred_check_branch
      %1151 = sbr.rel (0) target = $region21
    $region20: #{tpu_custom_call.1} parent=1 // pred_region
      %1153 = dma.done [#allocation3], 256
    $region21: #{tpu_custom_call.1} parent=1 // pred_fallthru
      _
    %1154 = vsyncpa [#allocation3], 1

</llo_original>
